<compile_context>
chip_gen: v5e
topology: v5e:2x2
jax: 0.10.0
libtpu: 0.0.40
codegen_flags: <defaults>
</compile_context>

<pallas_src>
import jax
import jax.numpy as jnp
from jax.experimental import pallas as pl
from jax.experimental.pallas import tpu as pltpu

# ---- small, module-consistent hyperparameters -------------------------------
CONTEXT_DIM    = 64
WORD_LEN       = 8
CHAR_VOCAB     = 16
CHAR_EMBED_DIM = 8
FFN_RANK       = 32
NUM_LAYERS     = 4

CHAR_DIM   = WORD_LEN * CHAR_EMBED_DIM        # 64
INPUT_DIM  = CONTEXT_DIM + CHAR_DIM           # 128
OUTPUT_DIM = WORD_LEN * CHAR_VOCAB            # 128

BATCH = 512    # many words per call -> real MXU occupancy


# ---- Pallas kernel -----------------------------------------------------------
def ffn_kernel(ctx_ref, chr_ref, a_main_ref, a_bias_ref, b_w_ref,
               w_out_ref, b_out_ref, out_ref):
    # ctx_ref:    (TM, 64)  bf16  context features tile
    # chr_ref:    (TM, 64)  bf16  flattened char-embedding tile
    # a_main_ref: (L, D, R) bf16  A^T without the bias-feature row
    # a_bias_ref: (L, 1, R) f32   A^T bias-feature row
    # b_w_ref:    (L, R, D) bf16  B^T
    # w_out_ref:  (D, O)    bf16  output Linear weight^T
    # b_out_ref:  (1, O)    f32   output Linear bias
    # out_ref:    (TM, O)   f32
    #
    # Assemble x in VMEM (fused concat; the (B, 128) activation never touches
    # HBM).  Residual stream is kept in f32.
    x = jnp.concatenate(
        [ctx_ref[...].astype(jnp.float32), chr_ref[...].astype(jnp.float32)],
        axis=-1)                                                  # (TM, D) f32
    for l in range(NUM_LAYERS):                                   # static unroll
        h = jnp.dot(x.astype(jnp.bfloat16), a_main_ref[l],
                    preferred_element_type=jnp.float32)           # (TM, R)
        h = h + a_bias_ref[l]                                     # f32 bias add
        y = jnp.dot(h.astype(jnp.bfloat16), b_w_ref[l],
                    preferred_element_type=jnp.float32)           # (TM, D)
        y = jnp.maximum(y, 0.0)                                   # relu (f32)
        x = x + y                                                 # residual (f32)
    out = jnp.dot(x.astype(jnp.bfloat16), w_out_ref[...],
                  preferred_element_type=jnp.float32)
    out_ref[...] = (out + b_out_ref[...]).astype(out_ref.dtype)


# ---- wrapper -----------------------------------------------------------------
def autocorrect_ffn_forward(context_vec, word_char_ids, params, tile_m=None):
    batch = context_vec.shape[0]

    # glue: embedding gather + flatten (matches torch view); cast activations
    # to bf16 so the tiles crossing HBM are half-width.
    char_vec = params["emb"][word_char_ids].reshape(batch, -1)    # (B, 64)
    ctx = context_vec.astype(jnp.bfloat16)
    chr_ = char_vec.astype(jnp.bfloat16)

    if tile_m is None:
        # Aim for ~2 coarse grid steps: one tile per TensorCore on v7x; on
        # v5e/v6e the second step costs only ~0.35us. Cap tiles at 512 rows.
        half = -(-max(batch, 1) // 2)          # ceil(batch / 2)
        half = -(-half // 8) * 8               # round up to sublane multiple
        tile_m = max(8, min(512, half))

    padded = pl.cdiv(batch, tile_m) * tile_m
    if padded != batch:
        # Rare fallback; demo batches are multiples of tile_m so no HBM copy.
        pad = padded - batch
        ctx = jnp.pad(ctx, ((0, pad), (0, 0)))
        chr_ = jnp.pad(chr_, ((0, pad), (0, 0)))

    grid_spec = pltpu.PrefetchScalarGridSpec(
        num_scalar_prefetch=0,
        grid=(padded // tile_m,),
        in_specs=[
            # activation tiles pipeline across the batch grid (bf16)
            pl.BlockSpec((tile_m, CONTEXT_DIM), lambda i: (i, 0)),
            pl.BlockSpec((tile_m, CHAR_DIM), lambda i: (i, 0)),
            # weights: constant index_map -> DMA'd once, VMEM-resident
            pl.BlockSpec((NUM_LAYERS, INPUT_DIM, FFN_RANK),
                         lambda i: (0, 0, 0)),
            pl.BlockSpec((NUM_LAYERS, 1, FFN_RANK), lambda i: (0, 0, 0)),
            pl.BlockSpec((NUM_LAYERS, FFN_RANK, INPUT_DIM),
                         lambda i: (0, 0, 0)),
            pl.BlockSpec((INPUT_DIM, OUTPUT_DIM), lambda i: (0, 0)),
            pl.BlockSpec((1, OUTPUT_DIM), lambda i: (0, 0)),
        ],
        out_specs=pl.BlockSpec((tile_m, OUTPUT_DIM), lambda i: (i, 0)),
    )

    out = pl.pallas_call(
        ffn_kernel,
        out_shape=jax.ShapeDtypeStruct((padded, OUTPUT_DIM), jnp.float32),
        grid_spec=grid_spec,
        compiler_params=pltpu.CompilerParams(
            dimension_semantics=("parallel",)),   # megacore split on v7x
    )(ctx, chr_, params["a_main"], params["a_bias"], params["b_w"],
      params["w_out"], params["b_out"])

    out = out[:batch]
    return out.reshape(-1, WORD_LEN, CHAR_VOCAB)


# ---- pure-JAX reference (same bf16-operand / f32-accum math) -----------------
def reference_forward(context_vec, word_char_ids, params):
    batch = context_vec.shape[0]
    char_vec = params["emb"][word_char_ids].reshape(batch, -1)
    ctx = context_vec.astype(jnp.bfloat16).astype(jnp.float32)
    chr_ = char_vec.astype(jnp.bfloat16).astype(jnp.float32)
    x = jnp.concatenate([ctx, chr_], axis=1)
    for l in range(NUM_LAYERS):
        h = jnp.dot(x.astype(jnp.bfloat16), params["a_main"][l],
                    preferred_element_type=jnp.float32)
        h = h + params["a_bias"][l]
        y = jnp.maximum(
            jnp.dot(h.astype(jnp.bfloat16), params["b_w"][l],
                    preferred_element_type=jnp.float32), 0.0)
        x = x + y
    out = jnp.dot(x.astype(jnp.bfloat16), params["w_out"],
                  preferred_element_type=jnp.float32) + params["b_out"]
    return out.reshape(-1, WORD_LEN, CHAR_VOCAB)


# ---- deterministic parameter init (synthetic; no checkpoint) -----------------
def init_params(key):
    keys = jax.random.split(key, 5)
    emb = jax.random.normal(keys[0], (CHAR_VOCAB, CHAR_EMBED_DIM),
                            jnp.float32) * 0.1
    # per-layer A: torch shape (rank, in_dim+1); store transposed & split
    a_t = jax.random.normal(
        keys[1], (NUM_LAYERS, INPUT_DIM + 1, FFN_RANK), jnp.float32) \
        / jnp.sqrt(jnp.float32(INPUT_DIM + 1))
    a_main = a_t[:, :INPUT_DIM, :].astype(jnp.bfloat16)   # (L, D, R) bf16
    a_bias = a_t[:, INPUT_DIM:, :]                        # (L, 1, R) f32
    # per-layer B: torch shape (out_dim, rank); store transposed, bf16
    b_w = (jax.random.normal(
        keys[2], (NUM_LAYERS, FFN_RANK, INPUT_DIM), jnp.float32)
        / jnp.sqrt(jnp.float32(FFN_RANK))).astype(jnp.bfloat16)
    # output layer: torch weight (O, D), bias (O,); store transposed
    w_out = (jax.random.normal(
        keys[3], (INPUT_DIM, OUTPUT_DIM), jnp.float32)
        / jnp.sqrt(jnp.float32(INPUT_DIM))).astype(jnp.bfloat16)
    b_out = jax.random.normal(keys[4], (1, OUTPUT_DIM), jnp.float32) * 0.01
    return {"emb": emb, "a_main": a_main, "a_bias": a_bias,
            "b_w": b_w, "w_out": w_out, "b_out": b_out}


if __name__ == "__main__":
    key = jax.random.PRNGKey(0)
    k_par, k_ctx, k_ids = jax.random.split(key, 3)

    params = init_params(k_par)
    context_vec = jax.random.normal(k_ctx, (BATCH, CONTEXT_DIM), jnp.float32)
    word_char_ids = jax.random.randint(
        k_ids, (BATCH, WORD_LEN), 0, CHAR_VOCAB, dtype=jnp.int32)

    fwd = jax.jit(autocorrect_ffn_forward)
    out = fwd(context_vec, word_char_ids, params)
    out = jax.block_until_ready(out)

    ref = reference_forward(context_vec, word_char_ids, params)
    assert out.shape == (BATCH, WORD_LEN, CHAR_VOCAB)
    assert jnp.allclose(out, ref, atol=2e-3, rtol=2e-3), (
        float(jnp.max(jnp.abs(out - ref))))

    print("KERNEL_OK")
</pallas_src>

<mosaic_0001>
module attributes {stable_mosaic.version = 11 : i64} {
  func.func @ffn_kernel(%arg0: i32, %arg1: memref<256x64xbf16, #tpu.memory_space<vmem>>, %arg2: memref<256x64xbf16, #tpu.memory_space<vmem>>, %arg3: memref<4x128x32xbf16, #tpu.memory_space<vmem>>, %arg4: memref<4x1x32xf32, #tpu.memory_space<vmem>>, %arg5: memref<4x32x128xbf16, #tpu.memory_space<vmem>>, %arg6: memref<128x128xbf16, #tpu.memory_space<vmem>>, %arg7: memref<1x128xf32, #tpu.memory_space<vmem>>, %arg8: memref<256x128xf32, #tpu.memory_space<vmem>>) attributes {dimension_semantics = [#tpu.dimension_semantics<parallel>], iteration_bounds = array<i64: 2>, scalar_prefetch = 0 : i64, scratch_operands = 0 : i64, tpu.core_type = #tpu.core_type<tc>, window_params = [{transform_indices = @transform_0, window_bounds = array<i64: 256, 64>}, {transform_indices = @transform_1, window_bounds = array<i64: 256, 64>}, {pipeline_mode = #tpu.pipeline_mode<synchronous>, transform_indices = @transform_2, window_bounds = array<i64: 4, 128, 32>}, {pipeline_mode = #tpu.pipeline_mode<synchronous>, transform_indices = @transform_3, window_bounds = array<i64: 4, 1, 32>}, {pipeline_mode = #tpu.pipeline_mode<synchronous>, transform_indices = @transform_4, window_bounds = array<i64: 4, 32, 128>}, {pipeline_mode = #tpu.pipeline_mode<synchronous>, transform_indices = @transform_5, window_bounds = array<i64: 128, 128>}, {pipeline_mode = #tpu.pipeline_mode<synchronous>, transform_indices = @transform_6, window_bounds = array<i64: 1, 128>}, {transform_indices = @transform_7, window_bounds = array<i64: 256, 128>}]} {
    %c0 = arith.constant 0 : index
    %c0_0 = arith.constant 0 : index
    %0 = vector.load %arg1[%c0, %c0_0] : memref<256x64xbf16, #tpu.memory_space<vmem>>, vector<256x64xbf16>
    %1 = arith.extf %0 : vector<256x64xbf16> to vector<256x64xf32>
    %c0_1 = arith.constant 0 : index
    %c0_2 = arith.constant 0 : index
    %2 = vector.load %arg2[%c0_1, %c0_2] : memref<256x64xbf16, #tpu.memory_space<vmem>>, vector<256x64xbf16>
    %3 = arith.extf %2 : vector<256x64xbf16> to vector<256x64xf32>
    %4 = tpu.concatenate %1, %3 in 1 : vector<256x64xf32>, vector<256x64xf32> -> vector<256x128xf32>
    %5 = arith.truncf %4 : vector<256x128xf32> to vector<256x128xbf16>
    %c0_3 = arith.constant 0 : index
    %c0_4 = arith.constant 0 : index
    %c0_5 = arith.constant 0 : index
    %6 = vector.load %arg3[%c0_3, %c0_4, %c0_5] : memref<4x128x32xbf16, #tpu.memory_space<vmem>>, vector<1x128x32xbf16>
    %7 = vector.shape_cast %6 : vector<1x128x32xbf16> to vector<128x32xbf16>
    %cst = arith.constant dense<0.000000e+00> : vector<256x32xf32>
    %8 = tpu.matmul %5, %7, %cst {dimension_numbers = #tpu.dot_dimension_numbers<[1], [0], [0], [1], [0, 0, 1, 1], [], []>} : vector<256x128xbf16>, vector<128x32xbf16>, vector<256x32xf32> -> vector<256x32xf32>
    %c0_6 = arith.constant 0 : index
    %c0_7 = arith.constant 0 : index
    %c0_8 = arith.constant 0 : index
    %9 = vector.load %arg4[%c0_6, %c0_7, %c0_8] : memref<4x1x32xf32, #tpu.memory_space<vmem>>, vector<1x1x32xf32>
    %10 = vector.shape_cast %9 : vector<1x1x32xf32> to vector<1x32xf32>
    %11 = vector.broadcast %10 : vector<1x32xf32> to vector<256x32xf32>
    %12 = arith.addf %8, %11 : vector<256x32xf32>
    %13 = arith.truncf %12 : vector<256x32xf32> to vector<256x32xbf16>
    %c0_9 = arith.constant 0 : index
    %c0_10 = arith.constant 0 : index
    %c0_11 = arith.constant 0 : index
    %14 = vector.load %arg5[%c0_9, %c0_10, %c0_11] : memref<4x32x128xbf16, #tpu.memory_space<vmem>>, vector<1x32x128xbf16>
    %15 = vector.shape_cast %14 : vector<1x32x128xbf16> to vector<32x128xbf16>
    %cst_12 = arith.constant dense<0.000000e+00> : vector<256x128xf32>
    %16 = tpu.matmul %13, %15, %cst_12 {dimension_numbers = #tpu.dot_dimension_numbers<[1], [0], [0], [1], [0, 0, 1, 1], [], []>} : vector<256x32xbf16>, vector<32x128xbf16>, vector<256x128xf32> -> vector<256x128xf32>
    %cst_13 = arith.constant 0.000000e+00 : f32
    %17 = vector.broadcast %cst_13 : f32 to vector<256x128xf32>
    %18 = arith.maximumf %16, %17 : vector<256x128xf32>
    %19 = arith.addf %4, %18 : vector<256x128xf32>
    %20 = arith.truncf %19 : vector<256x128xf32> to vector<256x128xbf16>
    %c1 = arith.constant 1 : index
    %c0_14 = arith.constant 0 : index
    %c0_15 = arith.constant 0 : index
    %21 = vector.load %arg3[%c1, %c0_14, %c0_15] : memref<4x128x32xbf16, #tpu.memory_space<vmem>>, vector<1x128x32xbf16>
    %22 = vector.shape_cast %21 : vector<1x128x32xbf16> to vector<128x32xbf16>
    %cst_16 = arith.constant dense<0.000000e+00> : vector<256x32xf32>
    %23 = tpu.matmul %20, %22, %cst_16 {dimension_numbers = #tpu.dot_dimension_numbers<[1], [0], [0], [1], [0, 0, 1, 1], [], []>} : vector<256x128xbf16>, vector<128x32xbf16>, vector<256x32xf32> -> vector<256x32xf32>
    %c1_17 = arith.constant 1 : index
    %c0_18 = arith.constant 0 : index
    %c0_19 = arith.constant 0 : index
    %24 = vector.load %arg4[%c1_17, %c0_18, %c0_19] : memref<4x1x32xf32, #tpu.memory_space<vmem>>, vector<1x1x32xf32>
    %25 = vector.shape_cast %24 : vector<1x1x32xf32> to vector<1x32xf32>
    %26 = vector.broadcast %25 : vector<1x32xf32> to vector<256x32xf32>
    %27 = arith.addf %23, %26 : vector<256x32xf32>
    %28 = arith.truncf %27 : vector<256x32xf32> to vector<256x32xbf16>
    %c1_20 = arith.constant 1 : index
    %c0_21 = arith.constant 0 : index
    %c0_22 = arith.constant 0 : index
    %29 = vector.load %arg5[%c1_20, %c0_21, %c0_22] : memref<4x32x128xbf16, #tpu.memory_space<vmem>>, vector<1x32x128xbf16>
    %30 = vector.shape_cast %29 : vector<1x32x128xbf16> to vector<32x128xbf16>
    %cst_23 = arith.constant dense<0.000000e+00> : vector<256x128xf32>
    %31 = tpu.matmul %28, %30, %cst_23 {dimension_numbers = #tpu.dot_dimension_numbers<[1], [0], [0], [1], [0, 0, 1, 1], [], []>} : vector<256x32xbf16>, vector<32x128xbf16>, vector<256x128xf32> -> vector<256x128xf32>
    %cst_24 = arith.constant 0.000000e+00 : f32
    %32 = vector.broadcast %cst_24 : f32 to vector<256x128xf32>
    %33 = arith.maximumf %31, %32 : vector<256x128xf32>
    %34 = arith.addf %19, %33 : vector<256x128xf32>
    %35 = arith.truncf %34 : vector<256x128xf32> to vector<256x128xbf16>
    %c2 = arith.constant 2 : index
    %c0_25 = arith.constant 0 : index
    %c0_26 = arith.constant 0 : index
    %36 = vector.load %arg3[%c2, %c0_25, %c0_26] : memref<4x128x32xbf16, #tpu.memory_space<vmem>>, vector<1x128x32xbf16>
    %37 = vector.shape_cast %36 : vector<1x128x32xbf16> to vector<128x32xbf16>
    %cst_27 = arith.constant dense<0.000000e+00> : vector<256x32xf32>
    %38 = tpu.matmul %35, %37, %cst_27 {dimension_numbers = #tpu.dot_dimension_numbers<[1], [0], [0], [1], [0, 0, 1, 1], [], []>} : vector<256x128xbf16>, vector<128x32xbf16>, vector<256x32xf32> -> vector<256x32xf32>
    %c2_28 = arith.constant 2 : index
    %c0_29 = arith.constant 0 : index
    %c0_30 = arith.constant 0 : index
    %39 = vector.load %arg4[%c2_28, %c0_29, %c0_30] : memref<4x1x32xf32, #tpu.memory_space<vmem>>, vector<1x1x32xf32>
    %40 = vector.shape_cast %39 : vector<1x1x32xf32> to vector<1x32xf32>
    %41 = vector.broadcast %40 : vector<1x32xf32> to vector<256x32xf32>
    %42 = arith.addf %38, %41 : vector<256x32xf32>
    %43 = arith.truncf %42 : vector<256x32xf32> to vector<256x32xbf16>
    %c2_31 = arith.constant 2 : index
    %c0_32 = arith.constant 0 : index
    %c0_33 = arith.constant 0 : index
    %44 = vector.load %arg5[%c2_31, %c0_32, %c0_33] : memref<4x32x128xbf16, #tpu.memory_space<vmem>>, vector<1x32x128xbf16>
    %45 = vector.shape_cast %44 : vector<1x32x128xbf16> to vector<32x128xbf16>
    %cst_34 = arith.constant dense<0.000000e+00> : vector<256x128xf32>
    %46 = tpu.matmul %43, %45, %cst_34 {dimension_numbers = #tpu.dot_dimension_numbers<[1], [0], [0], [1], [0, 0, 1, 1], [], []>} : vector<256x32xbf16>, vector<32x128xbf16>, vector<256x128xf32> -> vector<256x128xf32>
    %cst_35 = arith.constant 0.000000e+00 : f32
    %47 = vector.broadcast %cst_35 : f32 to vector<256x128xf32>
    %48 = arith.maximumf %46, %47 : vector<256x128xf32>
    %49 = arith.addf %34, %48 : vector<256x128xf32>
    %50 = arith.truncf %49 : vector<256x128xf32> to vector<256x128xbf16>
    %c3 = arith.constant 3 : index
    %c0_36 = arith.constant 0 : index
    %c0_37 = arith.constant 0 : index
    %51 = vector.load %arg3[%c3, %c0_36, %c0_37] : memref<4x128x32xbf16, #tpu.memory_space<vmem>>, vector<1x128x32xbf16>
    %52 = vector.shape_cast %51 : vector<1x128x32xbf16> to vector<128x32xbf16>
    %cst_38 = arith.constant dense<0.000000e+00> : vector<256x32xf32>
    %53 = tpu.matmul %50, %52, %cst_38 {dimension_numbers = #tpu.dot_dimension_numbers<[1], [0], [0], [1], [0, 0, 1, 1], [], []>} : vector<256x128xbf16>, vector<128x32xbf16>, vector<256x32xf32> -> vector<256x32xf32>
    %c3_39 = arith.constant 3 : index
    %c0_40 = arith.constant 0 : index
    %c0_41 = arith.constant 0 : index
    %54 = vector.load %arg4[%c3_39, %c0_40, %c0_41] : memref<4x1x32xf32, #tpu.memory_space<vmem>>, vector<1x1x32xf32>
    %55 = vector.shape_cast %54 : vector<1x1x32xf32> to vector<1x32xf32>
    %56 = vector.broadcast %55 : vector<1x32xf32> to vector<256x32xf32>
    %57 = arith.addf %53, %56 : vector<256x32xf32>
    %58 = arith.truncf %57 : vector<256x32xf32> to vector<256x32xbf16>
    %c3_42 = arith.constant 3 : index
    %c0_43 = arith.constant 0 : index
    %c0_44 = arith.constant 0 : index
    %59 = vector.load %arg5[%c3_42, %c0_43, %c0_44] : memref<4x32x128xbf16, #tpu.memory_space<vmem>>, vector<1x32x128xbf16>
    %60 = vector.shape_cast %59 : vector<1x32x128xbf16> to vector<32x128xbf16>
    %cst_45 = arith.constant dense<0.000000e+00> : vector<256x128xf32>
    %61 = tpu.matmul %58, %60, %cst_45 {dimension_numbers = #tpu.dot_dimension_numbers<[1], [0], [0], [1], [0, 0, 1, 1], [], []>} : vector<256x32xbf16>, vector<32x128xbf16>, vector<256x128xf32> -> vector<256x128xf32>
    %cst_46 = arith.constant 0.000000e+00 : f32
    %62 = vector.broadcast %cst_46 : f32 to vector<256x128xf32>
    %63 = arith.maximumf %61, %62 : vector<256x128xf32>
    %64 = arith.addf %49, %63 : vector<256x128xf32>
    %65 = arith.truncf %64 : vector<256x128xf32> to vector<256x128xbf16>
    %c0_47 = arith.constant 0 : index
    %c0_48 = arith.constant 0 : index
    %66 = vector.load %arg6[%c0_47, %c0_48] : memref<128x128xbf16, #tpu.memory_space<vmem>>, vector<128x128xbf16>
    %cst_49 = arith.constant dense<0.000000e+00> : vector<256x128xf32>
    %67 = tpu.matmul %65, %66, %cst_49 {dimension_numbers = #tpu.dot_dimension_numbers<[1], [0], [0], [1], [0, 0, 1, 1], [], []>} : vector<256x128xbf16>, vector<128x128xbf16>, vector<256x128xf32> -> vector<256x128xf32>
    %c0_50 = arith.constant 0 : index
    %c0_51 = arith.constant 0 : index
    %68 = vector.load %arg7[%c0_50, %c0_51] : memref<1x128xf32, #tpu.memory_space<vmem>>, vector<1x128xf32>
    %69 = vector.broadcast %68 : vector<1x128xf32> to vector<256x128xf32>
    %70 = arith.addf %67, %69 : vector<256x128xf32>
    %c0_52 = arith.constant 0 : index
    %c0_53 = arith.constant 0 : index
    %71 = vector.load %arg8[%c0_52, %c0_53] : memref<256x128xf32, #tpu.memory_space<vmem>>, vector<256x128xf32>
    tpu.vector_store %arg8[%c0_52, %c0_53], %70 {strides = array<i32>} : memref<256x128xf32, #tpu.memory_space<vmem>>, vector<256x128xf32>,
    return
  }
  func.func @transform_0(%arg0: i32) -> (i32, i32) {
    %c0_i32 = arith.constant 0 : i32
    %c0_i32_0 = arith.constant 0 : i32
    return %arg0, %c0_i32 : i32, i32
  }
  func.func @transform_1(%arg0: i32) -> (i32, i32) {
    %c0_i32 = arith.constant 0 : i32
    %c0_i32_0 = arith.constant 0 : i32
    return %arg0, %c0_i32 : i32, i32
  }
  func.func @transform_2(%arg0: i32) -> (i32, i32, i32) {
    %c0_i32 = arith.constant 0 : i32
    %c0_i32_0 = arith.constant 0 : i32
    %c0_i32_1 = arith.constant 0 : i32
    %c0_i32_2 = arith.constant 0 : i32
    return %c0_i32, %c0_i32_0, %c0_i32_1 : i32, i32, i32
  }
  func.func @transform_3(%arg0: i32) -> (i32, i32, i32) {
    %c0_i32 = arith.constant 0 : i32
    %c0_i32_0 = arith.constant 0 : i32
    %c0_i32_1 = arith.constant 0 : i32
    %c0_i32_2 = arith.constant 0 : i32
    return %c0_i32, %c0_i32_0, %c0_i32_1 : i32, i32, i32
  }
  func.func @transform_4(%arg0: i32) -> (i32, i32, i32) {
    %c0_i32 = arith.constant 0 : i32
    %c0_i32_0 = arith.constant 0 : i32
    %c0_i32_1 = arith.constant 0 : i32
    %c0_i32_2 = arith.constant 0 : i32
    return %c0_i32, %c0_i32_0, %c0_i32_1 : i32, i32, i32
  }
  func.func @transform_5(%arg0: i32) -> (i32, i32) {
    %c0_i32 = arith.constant 0 : i32
    %c0_i32_0 = arith.constant 0 : i32
    %c0_i32_1 = arith.constant 0 : i32
    return %c0_i32, %c0_i32_0 : i32, i32
  }
  func.func @transform_6(%arg0: i32) -> (i32, i32) {
    %c0_i32 = arith.constant 0 : i32
    %c0_i32_0 = arith.constant 0 : i32
    %c0_i32_1 = arith.constant 0 : i32
    return %c0_i32, %c0_i32_0 : i32, i32
  }
  func.func @transform_7(%arg0: i32) -> (i32, i32) {
    %c0_i32 = arith.constant 0 : i32
    %c0_i32_0 = arith.constant 0 : i32
    return %arg0, %c0_i32 : i32, i32
  }
}

</mosaic_0001>

<llo_original>
// kernel: autocorrect_ffn_forward.1
$region0: #{autocorrect_ffn_forward.1}
  #allocation0 [shape = 'u32[]', space=smem, size = 0x4, offset = 0x4, fixed_abs, tag = 'smem constant byte address 0x4 - core index']
  #allocation1 [shape = 'u32[72,128]{1,0:T(1,128)}', space=vmem, size = 0x9000, scoped, tag = 'internal scratch']
  %s0 = inlined_call_operand.vmem [shape: bf16[512,64], index: 0, kind: input, shape index: {}]
  %s1 = inlined_call_operand.vmem [shape: bf16[512,64], index: 1, kind: input, shape index: {}]
  %s2 = inlined_call_operand.vmem [shape: bf16[4,128,32], index: 2, kind: input, shape index: {}]
  %s3 = inlined_call_operand.vmem [shape: f32[4,1,32], index: 3, kind: input, shape index: {}]
  %s4 = inlined_call_operand.vmem [shape: bf16[4,32,128], index: 4, kind: input, shape index: {}]
  %s5 = inlined_call_operand.vmem [shape: bf16[128,128], index: 5, kind: input, shape index: {}]
  %s6 = inlined_call_operand.vmem [shape: f32[1,128], index: 6, kind: input, shape index: {}]
  %s7 = inlined_call_operand.vmem [shape: f32[512,128], index: 7, kind: output, shape index: {}]
  %s8 = sld [smem:[#allocation0]]
  $region61: #{autocorrect_ffn_forward.1} parent=0
    _
  %s10 = ssub.s32 1, %s8
  %s11 = scalar_select 0, %s10, %s8
  loop: start=0, step=1, limit=4
  $region2: #{autocorrect_ffn_forward.1} parent=0 // loop_pre_header
    _
  $region3: #{autocorrect_ffn_forward.1} parent=0 // loop_header
    %s13 = sphi 0, %s17
    %p14 = scmp.ge.s32.totalorder %s13, 4
    %s23 = sphi 0, %s25
    %s26 = sphi 0, %s23
    %s27 = sphi 0, %s26
    %s43 = sphi 0, %s27
    %s49 = sphi 0, %s51
    %s52 = sphi 0, %s49
    %s53 = sphi 0, %s52
    %s69 = sphi 0, %s53
    %s73 = sphi 0, %s73
    %s75 = sphi 0, %s73
    %s76 = sphi 0, %s75
    %s90 = sphi 0, %s76
    %s94 = sphi 0, %s94
    %s96 = sphi 0, %s94
    %s97 = sphi 0, %s96
    %s111 = sphi 0, %s97
    %s115 = sphi 0, %s115
    %s117 = sphi 0, %s115
    %s118 = sphi 0, %s117
    %s132 = sphi 0, %s118
    %s136 = sphi 0, %s136
    %s138 = sphi 0, %s136
    %s139 = sphi 0, %s138
    %s153 = sphi 0, %s139
    %s157 = sphi 0, %s157
    %s159 = sphi 0, %s157
    %s160 = sphi 0, %s159
    %s174 = sphi 0, %s160
    %s180 = sphi 0, %s182
    %s183 = sphi 0, %s180
    %s184 = sphi 0, %s183
    %s200 = sphi 0, %s184
  $region4: #{autocorrect_ffn_forward.1} parent=0 // loop_header_branch
    %16 = sbr.rel (%p14) target = $region8
  $region5: #{autocorrect_ffn_forward.1} parent=0 // loop_body
    %s18 = ssub.s32 %s13, 1
    %s19 = ssub.s32 %s13, 2
    %s20 = sadd.s32 %s13, 1
    %s21 = ssub.s32 %s13, %s20
    %p22 = scmp.eq.s32.totalorder %s21, 0
    %s24 = sadd.s32 %s23, 1
    %s25 = scalar_select %p22, %s23, %s24
    %p28 = pneg %p22
    %p29 = scmp.eq.s32.totalorder %s13, 1
    %p30 = por %p28, %p29
    %p31 = scmp.ne.s32.totalorder %s23, %s26
    %p32 = scmp.eq.s32.totalorder %s13, 0
    %p33 = por %p31, %p32
    %p34 = scmp.ne.s32.totalorder %s23, %s26
    %p35 = scmp.eq.s32.totalorder %s18, 1
    %p36 = por %p34, %p35
    %p37 = scmp.ne.s32.totalorder %s26, %s27
    %p38 = scmp.eq.s32.totalorder %s18, 0
    %p39 = por %p37, %p38
    %p40 = scmp.ne.s32.totalorder %s26, %s27
    %p41 = scmp.eq.s32.totalorder %s19, 1
    %p42 = por %p40, %p41
    %p44 = scmp.ne.s32.totalorder %s27, %s43
    %p45 = scmp.eq.s32.totalorder %s19, 0
    %p46 = por %p44, %p45
    %s47 = ssub.s32 %s13, %s20
    %p48 = scmp.eq.s32.totalorder %s47, 0
    %s50 = sadd.s32 %s49, 1
    %s51 = scalar_select %p48, %s49, %s50
    %p54 = pneg %p48
    %p55 = scmp.eq.s32.totalorder %s13, 1
    %p56 = por %p54, %p55
    %p57 = scmp.ne.s32.totalorder %s49, %s52
    %p58 = scmp.eq.s32.totalorder %s13, 0
    %p59 = por %p57, %p58
    %p60 = scmp.ne.s32.totalorder %s49, %s52
    %p61 = scmp.eq.s32.totalorder %s18, 1
    %p62 = por %p60, %p61
    %p63 = scmp.ne.s32.totalorder %s52, %s53
    %p64 = scmp.eq.s32.totalorder %s18, 0
    %p65 = por %p63, %p64
    %p66 = scmp.ne.s32.totalorder %s52, %s53
    %p67 = scmp.eq.s32.totalorder %s19, 1
    %p68 = por %p66, %p67
    %p70 = scmp.ne.s32.totalorder %s53, %s69
    %p71 = scmp.eq.s32.totalorder %s19, 0
    %p72 = por %p70, %p71
    %s74 = sadd.s32 %s73, 1
    %p77 = scmp.eq.s32.totalorder %s13, 1
    %p78 = scmp.ne.s32.totalorder %s73, %s75
    %p79 = scmp.eq.s32.totalorder %s13, 0
    %p80 = por %p78, %p79
    %p81 = scmp.ne.s32.totalorder %s73, %s75
    %p82 = scmp.eq.s32.totalorder %s18, 1
    %p83 = por %p81, %p82
    %p84 = scmp.ne.s32.totalorder %s75, %s76
    %p85 = scmp.eq.s32.totalorder %s18, 0
    %p86 = por %p84, %p85
    %p87 = scmp.ne.s32.totalorder %s75, %s76
    %p88 = scmp.eq.s32.totalorder %s19, 1
    %p89 = por %p87, %p88
    %p91 = scmp.ne.s32.totalorder %s76, %s90
    %p92 = scmp.eq.s32.totalorder %s19, 0
    %p93 = por %p91, %p92
    %s95 = sadd.s32 %s94, 1
    %p98 = scmp.eq.s32.totalorder %s13, 1
    %p99 = scmp.ne.s32.totalorder %s94, %s96
    %p100 = scmp.eq.s32.totalorder %s13, 0
    %p101 = por %p99, %p100
    %p102 = scmp.ne.s32.totalorder %s94, %s96
    %p103 = scmp.eq.s32.totalorder %s18, 1
    %p104 = por %p102, %p103
    %p105 = scmp.ne.s32.totalorder %s96, %s97
    %p106 = scmp.eq.s32.totalorder %s18, 0
    %p107 = por %p105, %p106
    %p108 = scmp.ne.s32.totalorder %s96, %s97
    %p109 = scmp.eq.s32.totalorder %s19, 1
    %p110 = por %p108, %p109
    %p112 = scmp.ne.s32.totalorder %s97, %s111
    %p113 = scmp.eq.s32.totalorder %s19, 0
    %p114 = por %p112, %p113
    %s116 = sadd.s32 %s115, 1
    %p119 = scmp.eq.s32.totalorder %s13, 1
    %p120 = scmp.ne.s32.totalorder %s115, %s117
    %p121 = scmp.eq.s32.totalorder %s13, 0
    %p122 = por %p120, %p121
    %p123 = scmp.ne.s32.totalorder %s115, %s117
    %p124 = scmp.eq.s32.totalorder %s18, 1
    %p125 = por %p123, %p124
    %p126 = scmp.ne.s32.totalorder %s117, %s118
    %p127 = scmp.eq.s32.totalorder %s18, 0
    %p128 = por %p126, %p127
    %p129 = scmp.ne.s32.totalorder %s117, %s118
    %p130 = scmp.eq.s32.totalorder %s19, 1
    %p131 = por %p129, %p130
    %p133 = scmp.ne.s32.totalorder %s118, %s132
    %p134 = scmp.eq.s32.totalorder %s19, 0
    %p135 = por %p133, %p134
    %s137 = sadd.s32 %s136, 1
    %p140 = scmp.eq.s32.totalorder %s13, 1
    %p141 = scmp.ne.s32.totalorder %s136, %s138
    %p142 = scmp.eq.s32.totalorder %s13, 0
    %p143 = por %p141, %p142
    %p144 = scmp.ne.s32.totalorder %s136, %s138
    %p145 = scmp.eq.s32.totalorder %s18, 1
    %p146 = por %p144, %p145
    %p147 = scmp.ne.s32.totalorder %s138, %s139
    %p148 = scmp.eq.s32.totalorder %s18, 0
    %p149 = por %p147, %p148
    %p150 = scmp.ne.s32.totalorder %s138, %s139
    %p151 = scmp.eq.s32.totalorder %s19, 1
    %p152 = por %p150, %p151
    %p154 = scmp.ne.s32.totalorder %s139, %s153
    %p155 = scmp.eq.s32.totalorder %s19, 0
    %p156 = por %p154, %p155
    %s158 = sadd.s32 %s157, 1
    %p161 = scmp.eq.s32.totalorder %s13, 1
    %p162 = scmp.ne.s32.totalorder %s157, %s159
    %p163 = scmp.eq.s32.totalorder %s13, 0
    %p164 = por %p162, %p163
    %p165 = scmp.ne.s32.totalorder %s157, %s159
    %p166 = scmp.eq.s32.totalorder %s18, 1
    %p167 = por %p165, %p166
    %p168 = scmp.ne.s32.totalorder %s159, %s160
    %p169 = scmp.eq.s32.totalorder %s18, 0
    %p170 = por %p168, %p169
    %p171 = scmp.ne.s32.totalorder %s159, %s160
    %p172 = scmp.eq.s32.totalorder %s19, 1
    %p173 = por %p171, %p172
    %p175 = scmp.ne.s32.totalorder %s160, %s174
    %p176 = scmp.eq.s32.totalorder %s19, 0
    %p177 = por %p175, %p176
    %s178 = ssub.s32 %s13, %s20
    %p179 = scmp.eq.s32.totalorder %s178, 0
    %s181 = sadd.s32 %s180, 1
    %s182 = scalar_select %p179, %s180, %s181
    %p185 = pneg %p179
    %p186 = scmp.eq.s32.totalorder %s13, 1
    %p187 = por %p185, %p186
    %p188 = scmp.ne.s32.totalorder %s180, %s183
    %p189 = scmp.eq.s32.totalorder %s13, 0
    %p190 = por %p188, %p189
    %p191 = scmp.ne.s32.totalorder %s180, %s183
    %p192 = scmp.eq.s32.totalorder %s18, 1
    %p193 = por %p191, %p192
    %p194 = scmp.ne.s32.totalorder %s183, %s184
    %p195 = scmp.eq.s32.totalorder %s18, 0
    %p196 = por %p194, %p195
    %p197 = scmp.ne.s32.totalorder %s183, %s184
    %p198 = scmp.eq.s32.totalorder %s19, 1
    %p199 = por %p197, %p198
    %p201 = scmp.ne.s32.totalorder %s184, %s200
    %p202 = scmp.eq.s32.totalorder %s19, 0
    %p203 = por %p201, %p202
    %p204 = scmp.le.s32.totalorder 1, %s13
    %p205 = scmp.lt.s32.totalorder %s13, 3
    %p206 = pnand %p204, %p205
    %p207 = pneg %p206
    // Predicated region
    $region9: #{autocorrect_ffn_forward.1} parent=5 // pred_check
      _
    $region10: #{autocorrect_ffn_forward.1} parent=5 // pred_check_branch
      %209 = sbr.rel (%p206) target = $region12
    $region11: #{autocorrect_ffn_forward.1} parent=5 // pred_region
      %s210 = ssub.s32 %s13, 1
      // Predicated region
      $region13: #{autocorrect_ffn_forward.1} parent=11 // pred_check
        %p211 = pneg %p86
      $region14: #{autocorrect_ffn_forward.1} parent=11 // pred_check_branch
        %213 = sbr.rel (%p211) target = $region16
      $region15: #{autocorrect_ffn_forward.1} parent=11 // pred_region
        _
      $region16: #{autocorrect_ffn_forward.1} parent=11 // pred_fallthru
        _
      // Predicated region
      $region17: #{autocorrect_ffn_forward.1} parent=11 // pred_check
        %p214 = pneg %p107
      $region18: #{autocorrect_ffn_forward.1} parent=11 // pred_check_branch
        %216 = sbr.rel (%p214) target = $region20
      $region19: #{autocorrect_ffn_forward.1} parent=11 // pred_region
        _
      $region20: #{autocorrect_ffn_forward.1} parent=11 // pred_fallthru
        _
      // Predicated region
      $region21: #{autocorrect_ffn_forward.1} parent=11 // pred_check
        %p217 = pneg %p128
      $region22: #{autocorrect_ffn_forward.1} parent=11 // pred_check_branch
        %219 = sbr.rel (%p217) target = $region24
      $region23: #{autocorrect_ffn_forward.1} parent=11 // pred_region
        _
      $region24: #{autocorrect_ffn_forward.1} parent=11 // pred_fallthru
        _
      // Predicated region
      $region25: #{autocorrect_ffn_forward.1} parent=11 // pred_check
        %p220 = pneg %p149
      $region26: #{autocorrect_ffn_forward.1} parent=11 // pred_check_branch
        %222 = sbr.rel (%p220) target = $region28
      $region27: #{autocorrect_ffn_forward.1} parent=11 // pred_region
        _
      $region28: #{autocorrect_ffn_forward.1} parent=11 // pred_fallthru
        _
      // Predicated region
      $region29: #{autocorrect_ffn_forward.1} parent=11 // pred_check
        %p223 = pneg %p170
      $region30: #{autocorrect_ffn_forward.1} parent=11 // pred_check_branch
        %225 = sbr.rel (%p223) target = $region32
      $region31: #{autocorrect_ffn_forward.1} parent=11 // pred_region
        _
      $region32: #{autocorrect_ffn_forward.1} parent=11 // pred_fallthru
        _
    $region12: #{autocorrect_ffn_forward.1} parent=5 // pred_fallthru
      _
    %p226 = scmp.lt.s32.totalorder %s13, 2
    // Predicated region
    $region33: #{autocorrect_ffn_forward.1} parent=5 // pred_check
      %p227 = pneg %p226
    $region34: #{autocorrect_ffn_forward.1} parent=5 // pred_check_branch
      %229 = sbr.rel (%p227) target = $region36
    $region35: #{autocorrect_ffn_forward.1} parent=5 // pred_region
      // Predicated region
      $region37: #{autocorrect_ffn_forward.1} parent=35 // pred_check
        %p230 = pneg %p33
      $region38: #{autocorrect_ffn_forward.1} parent=35 // pred_check_branch
        %232 = sbr.rel (%p230) target = $region40
      $region39: #{autocorrect_ffn_forward.1} parent=35 // pred_region
        %s233 = smul.u32 32, %s13
        %p234 = scmp.lt.s32.totalorder %s233, 63
        %s235 = scalar_select %p234, %s233, 63
        %s236 = smul.addr %s235, 4
        %s237 = scalar_lea.vmem %s0, %s236
        %s238 = smul.u32 32, %s13
      $region40: #{autocorrect_ffn_forward.1} parent=35 // pred_fallthru
        _
      // Predicated region
      $region41: #{autocorrect_ffn_forward.1} parent=35 // pred_check
        %p239 = pneg %p59
      $region42: #{autocorrect_ffn_forward.1} parent=35 // pred_check_branch
        %241 = sbr.rel (%p239) target = $region44
      $region43: #{autocorrect_ffn_forward.1} parent=35 // pred_region
        %s242 = smul.u32 32, %s13
        %p243 = scmp.lt.s32.totalorder %s242, 63
        %s244 = scalar_select %p243, %s242, 63
        %s245 = smul.addr %s244, 4
        %s246 = scalar_lea.vmem %s1, %s245
        %s247 = smul.u32 32, %s13
      $region44: #{autocorrect_ffn_forward.1} parent=35 // pred_fallthru
        _
    $region36: #{autocorrect_ffn_forward.1} parent=5 // pred_fallthru
      _
    %p248 = scmp.le.s32.totalorder 1, %s13
    %p249 = scmp.lt.s32.totalorder %s13, 3
    %p250 = pnand %p248, %p249
    %p251 = pneg %p250
    // Predicated region
    $region45: #{autocorrect_ffn_forward.1} parent=5 // pred_check
      _
    $region46: #{autocorrect_ffn_forward.1} parent=5 // pred_check_branch
      %253 = sbr.rel (%p250) target = $region48
    $region47: #{autocorrect_ffn_forward.1} parent=5 // pred_region
      %s254 = ssub.s32 %s13, 1
      %s255 = smul.u32 32, %s18
      %p256 = scmp.lt.s32.totalorder %s255, 63
      %s257 = scalar_select %p256, %s255, 63
      %s258 = smul.addr %s257, 4
      %s259 = scalar_lea.vmem %s0, %s258
      %p260 = pneg %p39
      %p261 = pneg %p36
      %s262 = smul.u32 32, %s18
      %p263 = scmp.lt.s32.totalorder %s262, 63
      %s264 = scalar_select %p263, %s262, 63
      %s265 = smul.addr %s264, 4
      %s266 = scalar_lea.vmem %s1, %s265
      %p267 = pneg %p65
      %p268 = pneg %p62
      %p269 = pneg %p86
      %p270 = pneg %p83
      %p271 = pneg %p107
      %p272 = pneg %p104
      %p273 = pneg %p128
      %p274 = pneg %p125
      %p275 = pneg %p149
      %p276 = pneg %p146
      %p277 = pneg %p170
      %p278 = pneg %p167
      %p279 = pneg %p196
      %p280 = pneg %p193
      %s281 = smul.u32 32, %s18
      %p282 = scmp.lt.s32.totalorder %s281, 63
      %s283 = scalar_select %p282, %s281, 63
      %s284 = smul.addr %s283, 8
      %s285 = scalar_lea.vmem %s7, %s284
      %s286 = smul.u32 32, %s18
      %p287 = scmp.lt.s32.totalorder %s286, 63
      %s288 = scalar_select %p287, %s286, 63
      %s289 = smul.addr %s288, 4
      %s290 = scalar_lea.vmem %s0, %s289
      %s291 = smul.u32 32, %s18
      %s292 = smul.u32 32, %s18
      %p293 = scmp.lt.s32.totalorder %s292, 63
      %s294 = scalar_select %p293, %s292, 63
      %s295 = smul.addr %s294, 4
      %s296 = scalar_lea.vmem %s1, %s295
      %s297 = smul.u32 32, %s18
      %s298 = smul.u32 32, %s18
      %p299 = scmp.lt.s32.totalorder %s298, 63
      %s300 = scalar_select %p299, %s298, 63
      %s301 = smul.addr %s300, 8
      %s302 = scalar_lea.vmem %s7, %s301
      %s303 = smul.u32 32, %s18
      %v305 = vld [vmem:[%s290] sm:$0xf]
      %v306 = vld [vmem:[%s290 + $0x4] sm:$0xf]
      %v307 = vld [vmem:[%s290 + $0x8] sm:$0xf]
      %v308 = vld [vmem:[%s290 + $0xc] sm:$0xf]
      %v309 = vld [vmem:[%s290 + $0x10] sm:$0xf]
      %v310 = vld [vmem:[%s290 + $0x14] sm:$0xf]
      %v311 = vld [vmem:[%s290 + $0x18] sm:$0xf]
      %v312 = vld [vmem:[%s290 + $0x1c] sm:$0xf]
      %v313 = vld [vmem:[%s290 + $0x20] sm:$0xf]
      %v314 = vld [vmem:[%s290 + $0x24] sm:$0xf]
      %v315 = vld [vmem:[%s290 + $0x28] sm:$0xf]
      %v316 = vld [vmem:[%s290 + $0x2c] sm:$0xf]
      %v317 = vld [vmem:[%s290 + $0x30] sm:$0xf]
      %v318 = vld [vmem:[%s290 + $0x34] sm:$0xf]
      %v319 = vld [vmem:[%s290 + $0x38] sm:$0xf]
      %v320 = vld [vmem:[%s290 + $0x3c] sm:$0xf]
      %v321 = vld [vmem:[%s290 + $0x40] sm:$0xf]
      %v322 = vld [vmem:[%s290 + $0x44] sm:$0xf]
      %v323 = vld [vmem:[%s290 + $0x48] sm:$0xf]
      %v324 = vld [vmem:[%s290 + $0x4c] sm:$0xf]
      %v325 = vld [vmem:[%s290 + $0x50] sm:$0xf]
      %v326 = vld [vmem:[%s290 + $0x54] sm:$0xf]
      %v327 = vld [vmem:[%s290 + $0x58] sm:$0xf]
      %v328 = vld [vmem:[%s290 + $0x5c] sm:$0xf]
      %v329 = vld [vmem:[%s290 + $0x60] sm:$0xf]
      %v330 = vld [vmem:[%s290 + $0x64] sm:$0xf]
      %v331 = vld [vmem:[%s290 + $0x68] sm:$0xf]
      %v332 = vld [vmem:[%s290 + $0x6c] sm:$0xf]
      %v333 = vld [vmem:[%s290 + $0x70] sm:$0xf]
      %v334 = vld [vmem:[%s290 + $0x74] sm:$0xf]
      %v335 = vld [vmem:[%s290 + $0x78] sm:$0xf]
      %v336 = vld [vmem:[%s290 + $0x7c] sm:$0xf]
      %v337 = vunpack.c.l.bf16 %v305
      %v338 = vunpack.c.l.bf16 %v306
      %v339 = vunpack.c.l.bf16 %v307
      %v340 = vunpack.c.l.bf16 %v308
      %v341 = vunpack.c.l.bf16 %v309
      %v342 = vunpack.c.l.bf16 %v310
      %v343 = vunpack.c.l.bf16 %v311
      %v344 = vunpack.c.l.bf16 %v312
      %v345 = vunpack.c.l.bf16 %v313
      %v346 = vunpack.c.l.bf16 %v314
      %v347 = vunpack.c.l.bf16 %v315
      %v348 = vunpack.c.l.bf16 %v316
      %v349 = vunpack.c.l.bf16 %v317
      %v350 = vunpack.c.l.bf16 %v318
      %v351 = vunpack.c.l.bf16 %v319
      %v352 = vunpack.c.l.bf16 %v320
      %v353 = vunpack.c.l.bf16 %v321
      %v354 = vunpack.c.l.bf16 %v322
      %v355 = vunpack.c.l.bf16 %v323
      %v356 = vunpack.c.l.bf16 %v324
      %v357 = vunpack.c.l.bf16 %v325
      %v358 = vunpack.c.l.bf16 %v326
      %v359 = vunpack.c.l.bf16 %v327
      %v360 = vunpack.c.l.bf16 %v328
      %v361 = vunpack.c.l.bf16 %v329
      %v362 = vunpack.c.l.bf16 %v330
      %v363 = vunpack.c.l.bf16 %v331
      %v364 = vunpack.c.l.bf16 %v332
      %v365 = vunpack.c.l.bf16 %v333
      %v366 = vunpack.c.l.bf16 %v334
      %v367 = vunpack.c.l.bf16 %v335
      %v368 = vunpack.c.l.bf16 %v336
      %v369 = vld [vmem:[%s296] sm:$0xf]
      %v370 = vld [vmem:[%s296 + $0x4] sm:$0xf]
      %v371 = vld [vmem:[%s296 + $0x8] sm:$0xf]
      %v372 = vld [vmem:[%s296 + $0xc] sm:$0xf]
      %v373 = vld [vmem:[%s296 + $0x10] sm:$0xf]
      %v374 = vld [vmem:[%s296 + $0x14] sm:$0xf]
      %v375 = vld [vmem:[%s296 + $0x18] sm:$0xf]
      %v376 = vld [vmem:[%s296 + $0x1c] sm:$0xf]
      %v377 = vld [vmem:[%s296 + $0x20] sm:$0xf]
      %v378 = vld [vmem:[%s296 + $0x24] sm:$0xf]
      %v379 = vld [vmem:[%s296 + $0x28] sm:$0xf]
      %v380 = vld [vmem:[%s296 + $0x2c] sm:$0xf]
      %v381 = vld [vmem:[%s296 + $0x30] sm:$0xf]
      %v382 = vld [vmem:[%s296 + $0x34] sm:$0xf]
      %v383 = vld [vmem:[%s296 + $0x38] sm:$0xf]
      %v384 = vld [vmem:[%s296 + $0x3c] sm:$0xf]
      %v385 = vld [vmem:[%s296 + $0x40] sm:$0xf]
      %v386 = vld [vmem:[%s296 + $0x44] sm:$0xf]
      %v387 = vld [vmem:[%s296 + $0x48] sm:$0xf]
      %v388 = vld [vmem:[%s296 + $0x4c] sm:$0xf]
      %v389 = vld [vmem:[%s296 + $0x50] sm:$0xf]
      %v390 = vld [vmem:[%s296 + $0x54] sm:$0xf]
      %v391 = vld [vmem:[%s296 + $0x58] sm:$0xf]
      %v392 = vld [vmem:[%s296 + $0x5c] sm:$0xf]
      %v393 = vld [vmem:[%s296 + $0x60] sm:$0xf]
      %v394 = vld [vmem:[%s296 + $0x64] sm:$0xf]
      %v395 = vld [vmem:[%s296 + $0x68] sm:$0xf]
      %v396 = vld [vmem:[%s296 + $0x6c] sm:$0xf]
      %v397 = vld [vmem:[%s296 + $0x70] sm:$0xf]
      %v398 = vld [vmem:[%s296 + $0x74] sm:$0xf]
      %v399 = vld [vmem:[%s296 + $0x78] sm:$0xf]
      %v400 = vld [vmem:[%s296 + $0x7c] sm:$0xf]
      %v401 = vunpack.c.l.bf16 %v369
      %v402 = vunpack.c.l.bf16 %v370
      %v403 = vunpack.c.l.bf16 %v371
      %v404 = vunpack.c.l.bf16 %v372
      %v405 = vunpack.c.l.bf16 %v373
      %v406 = vunpack.c.l.bf16 %v374
      %v407 = vunpack.c.l.bf16 %v375
      %v408 = vunpack.c.l.bf16 %v376
      %v409 = vunpack.c.l.bf16 %v377
      %v410 = vunpack.c.l.bf16 %v378
      %v411 = vunpack.c.l.bf16 %v379
      %v412 = vunpack.c.l.bf16 %v380
      %v413 = vunpack.c.l.bf16 %v381
      %v414 = vunpack.c.l.bf16 %v382
      %v415 = vunpack.c.l.bf16 %v383
      %v416 = vunpack.c.l.bf16 %v384
      %v417 = vunpack.c.l.bf16 %v385
      %v418 = vunpack.c.l.bf16 %v386
      %v419 = vunpack.c.l.bf16 %v387
      %v420 = vunpack.c.l.bf16 %v388
      %v421 = vunpack.c.l.bf16 %v389
      %v422 = vunpack.c.l.bf16 %v390
      %v423 = vunpack.c.l.bf16 %v391
      %v424 = vunpack.c.l.bf16 %v392
      %v425 = vunpack.c.l.bf16 %v393
      %v426 = vunpack.c.l.bf16 %v394
      %v427 = vunpack.c.l.bf16 %v395
      %v428 = vunpack.c.l.bf16 %v396
      %v429 = vunpack.c.l.bf16 %v397
      %v430 = vunpack.c.l.bf16 %v398
      %v431 = vunpack.c.l.bf16 %v399
      %v432 = vunpack.c.l.bf16 %v400
      %465 = vrot.lane.b32.xlu0 %v401, 64
      %v466 = vpop.permute.xlu0 %465
      %467 = vrot.lane.b32.xlu0 %v402, 64
      %v468 = vpop.permute.xlu0 %467
      %469 = vrot.lane.b32.xlu0 %v403, 64
      %v470 = vpop.permute.xlu0 %469
      %471 = vrot.lane.b32.xlu0 %v404, 64
      %v472 = vpop.permute.xlu0 %471
      %473 = vrot.lane.b32.xlu0 %v405, 64
      %v474 = vpop.permute.xlu0 %473
      %475 = vrot.lane.b32.xlu0 %v406, 64
      %v476 = vpop.permute.xlu0 %475
      %477 = vrot.lane.b32.xlu0 %v407, 64
      %v478 = vpop.permute.xlu0 %477
      %479 = vrot.lane.b32.xlu0 %v408, 64
      %v480 = vpop.permute.xlu0 %479
      %481 = vrot.lane.b32.xlu0 %v409, 64
      %v482 = vpop.permute.xlu0 %481
      %483 = vrot.lane.b32.xlu0 %v410, 64
      %v484 = vpop.permute.xlu0 %483
      %485 = vrot.lane.b32.xlu0 %v411, 64
      %v486 = vpop.permute.xlu0 %485
      %487 = vrot.lane.b32.xlu0 %v412, 64
      %v488 = vpop.permute.xlu0 %487
      %489 = vrot.lane.b32.xlu0 %v413, 64
      %v490 = vpop.permute.xlu0 %489
      %491 = vrot.lane.b32.xlu0 %v414, 64
      %v492 = vpop.permute.xlu0 %491
      %493 = vrot.lane.b32.xlu0 %v415, 64
      %v494 = vpop.permute.xlu0 %493
      %495 = vrot.lane.b32.xlu0 %v416, 64
      %v496 = vpop.permute.xlu0 %495
      %497 = vrot.lane.b32.xlu0 %v417, 64
      %v498 = vpop.permute.xlu0 %497
      %499 = vrot.lane.b32.xlu0 %v418, 64
      %v500 = vpop.permute.xlu0 %499
      %501 = vrot.lane.b32.xlu0 %v419, 64
      %v502 = vpop.permute.xlu0 %501
      %503 = vrot.lane.b32.xlu0 %v420, 64
      %v504 = vpop.permute.xlu0 %503
      %505 = vrot.lane.b32.xlu0 %v421, 64
      %v506 = vpop.permute.xlu0 %505
      %507 = vrot.lane.b32.xlu0 %v422, 64
      %v508 = vpop.permute.xlu0 %507
      %509 = vrot.lane.b32.xlu0 %v423, 64
      %v510 = vpop.permute.xlu0 %509
      %511 = vrot.lane.b32.xlu0 %v424, 64
      %v512 = vpop.permute.xlu0 %511
      %513 = vrot.lane.b32.xlu0 %v425, 64
      %v514 = vpop.permute.xlu0 %513
      %515 = vrot.lane.b32.xlu0 %v426, 64
      %v516 = vpop.permute.xlu0 %515
      %517 = vrot.lane.b32.xlu0 %v427, 64
      %v518 = vpop.permute.xlu0 %517
      %519 = vrot.lane.b32.xlu0 %v428, 64
      %v520 = vpop.permute.xlu0 %519
      %521 = vrot.lane.b32.xlu0 %v429, 64
      %v522 = vpop.permute.xlu0 %521
      %523 = vrot.lane.b32.xlu0 %v430, 64
      %v524 = vpop.permute.xlu0 %523
      %525 = vrot.lane.b32.xlu0 %v431, 64
      %v526 = vpop.permute.xlu0 %525
      %527 = vrot.lane.b32.xlu0 %v432, 64
      %v528 = vpop.permute.xlu0 %527
      %vm561 = vcmask 523264
      %v562 = vsel %vm561, %v337, %v466
      %v563 = vsel %vm561, %v338, %v468
      %v564 = vsel %vm561, %v339, %v470
      %v565 = vsel %vm561, %v340, %v472
      %v566 = vsel %vm561, %v341, %v474
      %v567 = vsel %vm561, %v342, %v476
      %v568 = vsel %vm561, %v343, %v478
      %v569 = vsel %vm561, %v344, %v480
      %v570 = vsel %vm561, %v345, %v482
      %v571 = vsel %vm561, %v346, %v484
      %v572 = vsel %vm561, %v347, %v486
      %v573 = vsel %vm561, %v348, %v488
      %v574 = vsel %vm561, %v349, %v490
      %v575 = vsel %vm561, %v350, %v492
      %v576 = vsel %vm561, %v351, %v494
      %v577 = vsel %vm561, %v352, %v496
      %v578 = vsel %vm561, %v353, %v498
      %v579 = vsel %vm561, %v354, %v500
      %v580 = vsel %vm561, %v355, %v502
      %v581 = vsel %vm561, %v356, %v504
      %v582 = vsel %vm561, %v357, %v506
      %v583 = vsel %vm561, %v358, %v508
      %v584 = vsel %vm561, %v359, %v510
      %v585 = vsel %vm561, %v360, %v512
      %v586 = vsel %vm561, %v361, %v514
      %v587 = vsel %vm561, %v362, %v516
      %v588 = vsel %vm561, %v363, %v518
      %v589 = vsel %vm561, %v364, %v520
      %v590 = vsel %vm561, %v365, %v522
      %v591 = vsel %vm561, %v366, %v524
      %v592 = vsel %vm561, %v367, %v526
      %v593 = vsel %vm561, %v368, %v528
      %v594 = vpack.c.bf16 %v563, %v562
      %v595 = vpack.c.bf16 %v565, %v564
      %v596 = vpack.c.bf16 %v567, %v566
      %v597 = vpack.c.bf16 %v569, %v568
      %v598 = vpack.c.bf16 %v571, %v570
      %v599 = vpack.c.bf16 %v573, %v572
      %v600 = vpack.c.bf16 %v575, %v574
      %v601 = vpack.c.bf16 %v577, %v576
      %v602 = vpack.c.bf16 %v579, %v578
      %v603 = vpack.c.bf16 %v581, %v580
      %v604 = vpack.c.bf16 %v583, %v582
      %v605 = vpack.c.bf16 %v585, %v584
      %v606 = vpack.c.bf16 %v587, %v586
      %v607 = vpack.c.bf16 %v589, %v588
      %v608 = vpack.c.bf16 %v591, %v590
      %v609 = vpack.c.bf16 %v593, %v592
      %v610 = vld [vmem:[%s2] sm:$0xf]
      %v611 = vld [vmem:[%s2 + $0x4] sm:$0xf]
      %v612 = vld [vmem:[%s2 + $0x8] sm:$0xf]
      %v613 = vld [vmem:[%s2 + $0xc] sm:$0xf]
      %v614 = vld [vmem:[%s2 + $0x10] sm:$0xf]
      %v615 = vld [vmem:[%s2 + $0x14] sm:$0xf]
      %v616 = vld [vmem:[%s2 + $0x18] sm:$0xf]
      %v617 = vld [vmem:[%s2 + $0x1c] sm:$0xf]
      %v618 = vld [vmem:[%s2 + $0x20] sm:$0xf]
      %v619 = vld [vmem:[%s2 + $0x24] sm:$0xf]
      %v620 = vld [vmem:[%s2 + $0x28] sm:$0xf]
      %v621 = vld [vmem:[%s2 + $0x2c] sm:$0xf]
      %v622 = vld [vmem:[%s2 + $0x30] sm:$0xf]
      %v623 = vld [vmem:[%s2 + $0x34] sm:$0xf]
      %v624 = vld [vmem:[%s2 + $0x38] sm:$0xf]
      %v625 = vld [vmem:[%s2 + $0x3c] sm:$0xf]
      %v626 = vld [vmem:[%s3] sm:$0x1]
      %v628 = vperm.slane %v626, 0
      %v646 = vunpack.c.l.b16 %v610
      %v647 = vunpack.c.l.b16 %v611
      %v648 = vunpack.c.l.b16 %v612
      %v649 = vunpack.c.l.b16 %v613
      %v650 = vunpack.c.l.b16 %v614
      %v651 = vunpack.c.l.b16 %v615
      %v652 = vunpack.c.l.b16 %v616
      %v653 = vunpack.c.l.b16 %v617
      %v654 = vunpack.c.l.b16 %v618
      %v655 = vunpack.c.l.b16 %v619
      %v656 = vunpack.c.l.b16 %v620
      %v657 = vunpack.c.l.b16 %v621
      %v658 = vunpack.c.l.b16 %v622
      %v659 = vunpack.c.l.b16 %v623
      %v660 = vunpack.c.l.b16 %v624
      %v661 = vunpack.c.l.b16 %v625
      %v662 = vpack.c.b16 %v647, %v646
      %v663 = vpack.c.b16 %v649, %v648
      %v664 = vpack.c.b16 %v651, %v650
      %v665 = vpack.c.b16 %v653, %v652
      %v666 = vpack.c.b16 %v655, %v654
      %v667 = vpack.c.b16 %v657, %v656
      %v668 = vpack.c.b16 %v659, %v658
      %v669 = vpack.c.b16 %v661, %v660
      %678 = vmatpush.bf16.msra.mxu0 %v669
      %679 = vmatpush.bf16.msra.mxu0 %v668
      %680 = vmatpush.bf16.msra.mxu0 %v667
      %681 = vmatpush.bf16.msra.mxu0 %v666
      %682 = vmatpush.bf16.msra.mxu0 %v665
      %683 = vmatpush.bf16.msra.mxu0 %v664
      %684 = vmatpush.bf16.msra.mxu0 %v663
      %685 = vmatpush.bf16.msra.mxu0 %v662
      %686 = vmatmul.bf16.gmra.mxu0 %v594
      %v687 = vpop.f32.mrf.mxu0
      %v688 = vadd.f32 %v628, %v687
      %v689 = vpop.f32.mrf.mxu0
      %v690 = vadd.f32 %v628, %v689
      %691 = vmatmul.bf16.gmra.mxu0 %v595
      %v692 = vpop.f32.mrf.mxu0
      %v693 = vadd.f32 %v628, %v692
      %v694 = vpop.f32.mrf.mxu0
      %v695 = vadd.f32 %v628, %v694
      %696 = vmatmul.bf16.gmra.mxu0 %v596
      %v697 = vpop.f32.mrf.mxu0
      %v698 = vadd.f32 %v628, %v697
      %v699 = vpop.f32.mrf.mxu0
      %v700 = vadd.f32 %v628, %v699
      %701 = vmatmul.bf16.gmra.mxu0 %v597
      %v702 = vpop.f32.mrf.mxu0
      %v703 = vadd.f32 %v628, %v702
      %v704 = vpop.f32.mrf.mxu0
      %v705 = vadd.f32 %v628, %v704
      %706 = vmatmul.bf16.gmra.mxu0 %v598
      %v707 = vpop.f32.mrf.mxu0
      %v708 = vadd.f32 %v628, %v707
      %v709 = vpop.f32.mrf.mxu0
      %v710 = vadd.f32 %v628, %v709
      %711 = vmatmul.bf16.gmra.mxu0 %v599
      %v712 = vpop.f32.mrf.mxu0
      %v713 = vadd.f32 %v628, %v712
      %v714 = vpop.f32.mrf.mxu0
      %v715 = vadd.f32 %v628, %v714
      %716 = vmatmul.bf16.gmra.mxu0 %v600
      %v717 = vpop.f32.mrf.mxu0
      %v718 = vadd.f32 %v628, %v717
      %v719 = vpop.f32.mrf.mxu0
      %v720 = vadd.f32 %v628, %v719
      %721 = vmatmul.bf16.gmra.mxu0 %v601
      %v722 = vpop.f32.mrf.mxu0
      %v723 = vadd.f32 %v628, %v722
      %v724 = vpop.f32.mrf.mxu0
      %v725 = vadd.f32 %v628, %v724
      %726 = vmatmul.bf16.gmra.mxu0 %v602
      %v727 = vpop.f32.mrf.mxu0
      %v728 = vadd.f32 %v628, %v727
      %v729 = vpop.f32.mrf.mxu0
      %v730 = vadd.f32 %v628, %v729
      %731 = vmatmul.bf16.gmra.mxu0 %v603
      %v732 = vpop.f32.mrf.mxu0
      %v733 = vadd.f32 %v628, %v732
      %v734 = vpop.f32.mrf.mxu0
      %v735 = vadd.f32 %v628, %v734
      %736 = vmatmul.bf16.gmra.mxu0 %v604
      %v737 = vpop.f32.mrf.mxu0
      %v738 = vadd.f32 %v628, %v737
      %v739 = vpop.f32.mrf.mxu0
      %v740 = vadd.f32 %v628, %v739
      %741 = vmatmul.bf16.gmra.mxu0 %v605
      %v742 = vpop.f32.mrf.mxu0
      %v743 = vadd.f32 %v628, %v742
      %v744 = vpop.f32.mrf.mxu0
      %v745 = vadd.f32 %v628, %v744
      %746 = vmatmul.bf16.gmra.mxu0 %v606
      %v747 = vpop.f32.mrf.mxu0
      %v748 = vadd.f32 %v628, %v747
      %v749 = vpop.f32.mrf.mxu0
      %v750 = vadd.f32 %v628, %v749
      %751 = vmatmul.bf16.gmra.mxu0 %v607
      %v752 = vpop.f32.mrf.mxu0
      %v753 = vadd.f32 %v628, %v752
      %v754 = vpop.f32.mrf.mxu0
      %v755 = vadd.f32 %v628, %v754
      %756 = vmatmul.bf16.gmra.mxu0 %v608
      %v757 = vpop.f32.mrf.mxu0
      %v758 = vadd.f32 %v628, %v757
      %v759 = vpop.f32.mrf.mxu0
      %v760 = vadd.f32 %v628, %v759
      %761 = vmatmul.bf16.gmra.mxu0 %v609
      %v762 = vpop.f32.mrf.mxu0
      %v763 = vadd.f32 %v628, %v762
      %v764 = vpop.f32.mrf.mxu0
      %v765 = vadd.f32 %v628, %v764
      %766 = vdwg.mxu0
      %v767 = vpack.c.bf16 %v690, %v688
      %v768 = vpack.c.bf16 %v695, %v693
      %v769 = vpack.c.bf16 %v700, %v698
      %v770 = vpack.c.bf16 %v705, %v703
      %v771 = vpack.c.bf16 %v710, %v708
      %v772 = vpack.c.bf16 %v715, %v713
      %v773 = vpack.c.bf16 %v720, %v718
      %v774 = vpack.c.bf16 %v725, %v723
      %v775 = vpack.c.bf16 %v730, %v728
      %v776 = vpack.c.bf16 %v735, %v733
      %v777 = vpack.c.bf16 %v740, %v738
      %v778 = vpack.c.bf16 %v745, %v743
      %v779 = vpack.c.bf16 %v750, %v748
      %v780 = vpack.c.bf16 %v755, %v753
      %v781 = vpack.c.bf16 %v760, %v758
      %v782 = vpack.c.bf16 %v765, %v763
      %v783 = vld [vmem:[%s4] sm:$0xf]
      %v784 = vld [vmem:[%s4 + $0x4] sm:$0xf]
      %v785 = vld [vmem:[%s4 + $0x8] sm:$0xf]
      %v786 = vld [vmem:[%s4 + $0xc] sm:$0xf]
      %v791 = vunpack.c.l.b16 %v783
      %v792 = vunpack.c.l.b16 %v784
      %v793 = vunpack.c.l.b16 %v785
      %v794 = vunpack.c.l.b16 %v786
      %v795 = vpack.c.b16 %v792, %v791
      %v796 = vpack.c.b16 %v794, %v793
      %vm799 = vcmask 261120
      %v801 = vsel %vm799, %v767, 0
      %v804 = vsel %vm799, %v768, 0
      %v807 = vsel %vm799, %v769, 0
      %v810 = vsel %vm799, %v770, 0
      %v813 = vsel %vm799, %v771, 0
      %v816 = vsel %vm799, %v772, 0
      %v819 = vsel %vm799, %v773, 0
      %v822 = vsel %vm799, %v774, 0
      %v825 = vsel %vm799, %v775, 0
      %v828 = vsel %vm799, %v776, 0
      %v831 = vsel %vm799, %v777, 0
      %v834 = vsel %vm799, %v778, 0
      %v837 = vsel %vm799, %v779, 0
      %v840 = vsel %vm799, %v780, 0
      %v843 = vsel %vm799, %v781, 0
      %v846 = vsel %vm799, %v782, 0
      %848 = vmatpush.bf16.msra.mxu0 0
      %849 = vmatpush.bf16.msra.mxu0 0
      %850 = vmatpush.bf16.msra.mxu0 0
      %851 = vmatpush.bf16.msra.mxu0 0
      %852 = vmatpush.bf16.msra.mxu0 0
      %853 = vmatpush.bf16.msra.mxu0 0
      %854 = vmatpush.bf16.msra.mxu0 %v796
      %855 = vmatpush.bf16.msra.mxu0 %v795
      %856 = vmatmul.bf16.gmra.mxu0 %v801
      %v857 = vpop.f32.mrf.mxu0
      %v858 = vadd.f32 0.0, %v857
      %v859 = vpop.f32.mrf.mxu0
      %v860 = vadd.f32 0.0, %v859
      %861 = vmatmul.bf16.gmra.mxu0 %v804
      %v862 = vpop.f32.mrf.mxu0
      %v863 = vadd.f32 0.0, %v862
      %v864 = vpop.f32.mrf.mxu0
      %v865 = vadd.f32 0.0, %v864
      %866 = vmatmul.bf16.gmra.mxu0 %v807
      %v867 = vpop.f32.mrf.mxu0
      %v868 = vadd.f32 0.0, %v867
      %v869 = vpop.f32.mrf.mxu0
      %v870 = vadd.f32 0.0, %v869
      %871 = vmatmul.bf16.gmra.mxu0 %v810
      %v872 = vpop.f32.mrf.mxu0
      %v873 = vadd.f32 0.0, %v872
      %v874 = vpop.f32.mrf.mxu0
      %v875 = vadd.f32 0.0, %v874
      %876 = vmatmul.bf16.gmra.mxu0 %v813
      %v877 = vpop.f32.mrf.mxu0
      %v878 = vadd.f32 0.0, %v877
      %v879 = vpop.f32.mrf.mxu0
      %v880 = vadd.f32 0.0, %v879
      %881 = vmatmul.bf16.gmra.mxu0 %v816
      %v882 = vpop.f32.mrf.mxu0
      %v883 = vadd.f32 0.0, %v882
      %v884 = vpop.f32.mrf.mxu0
      %v885 = vadd.f32 0.0, %v884
      %886 = vmatmul.bf16.gmra.mxu0 %v819
      %v887 = vpop.f32.mrf.mxu0
      %v888 = vadd.f32 0.0, %v887
      %v889 = vpop.f32.mrf.mxu0
      %v890 = vadd.f32 0.0, %v889
      %891 = vmatmul.bf16.gmra.mxu0 %v822
      %v892 = vpop.f32.mrf.mxu0
      %v893 = vadd.f32 0.0, %v892
      %v894 = vpop.f32.mrf.mxu0
      %v895 = vadd.f32 0.0, %v894
      %896 = vmatmul.bf16.gmra.mxu0 %v825
      %v897 = vpop.f32.mrf.mxu0
      %v898 = vadd.f32 0.0, %v897
      %v899 = vpop.f32.mrf.mxu0
      %v900 = vadd.f32 0.0, %v899
      %901 = vmatmul.bf16.gmra.mxu0 %v828
      %v902 = vpop.f32.mrf.mxu0
      %v903 = vadd.f32 0.0, %v902
      %v904 = vpop.f32.mrf.mxu0
      %v905 = vadd.f32 0.0, %v904
      %906 = vmatmul.bf16.gmra.mxu0 %v831
      %v907 = vpop.f32.mrf.mxu0
      %v908 = vadd.f32 0.0, %v907
      %v909 = vpop.f32.mrf.mxu0
      %v910 = vadd.f32 0.0, %v909
      %911 = vmatmul.bf16.gmra.mxu0 %v834
      %v912 = vpop.f32.mrf.mxu0
      %v913 = vadd.f32 0.0, %v912
      %v914 = vpop.f32.mrf.mxu0
      %v915 = vadd.f32 0.0, %v914
      %916 = vmatmul.bf16.gmra.mxu0 %v837
      %v917 = vpop.f32.mrf.mxu0
      %v918 = vadd.f32 0.0, %v917
      %v919 = vpop.f32.mrf.mxu0
      %v920 = vadd.f32 0.0, %v919
      %921 = vmatmul.bf16.gmra.mxu0 %v840
      %v922 = vpop.f32.mrf.mxu0
      %v923 = vadd.f32 0.0, %v922
      %v924 = vpop.f32.mrf.mxu0
      %v925 = vadd.f32 0.0, %v924
      %926 = vmatmul.bf16.gmra.mxu0 %v843
      %v927 = vpop.f32.mrf.mxu0
      %v928 = vadd.f32 0.0, %v927
      %v929 = vpop.f32.mrf.mxu0
      %v930 = vadd.f32 0.0, %v929
      %931 = vmatmul.bf16.gmra.mxu0 %v846
      %v932 = vpop.f32.mrf.mxu0
      %v933 = vadd.f32 0.0, %v932
      %v934 = vpop.f32.mrf.mxu0
      %v935 = vadd.f32 0.0, %v934
      %936 = vdwg.mxu0
      %v937 = vmax.f32 %v858, 0.0
      %v938 = vmax.f32 %v860, 0.0
      %v939 = vmax.f32 %v863, 0.0
      %v940 = vmax.f32 %v865, 0.0
      %v941 = vmax.f32 %v868, 0.0
      %v942 = vmax.f32 %v870, 0.0
      %v943 = vmax.f32 %v873, 0.0
      %v944 = vmax.f32 %v875, 0.0
      %v945 = vmax.f32 %v878, 0.0
      %v946 = vmax.f32 %v880, 0.0
      %v947 = vmax.f32 %v883, 0.0
      %v948 = vmax.f32 %v885, 0.0
      %v949 = vmax.f32 %v888, 0.0
      %v950 = vmax.f32 %v890, 0.0
      %v951 = vmax.f32 %v893, 0.0
      %v952 = vmax.f32 %v895, 0.0
      %v953 = vmax.f32 %v898, 0.0
      %v954 = vmax.f32 %v900, 0.0
      %v955 = vmax.f32 %v903, 0.0
      %v956 = vmax.f32 %v905, 0.0
      %v957 = vmax.f32 %v908, 0.0
      %v958 = vmax.f32 %v910, 0.0
      %v959 = vmax.f32 %v913, 0.0
      %v960 = vmax.f32 %v915, 0.0
      %v961 = vmax.f32 %v918, 0.0
      %v962 = vmax.f32 %v920, 0.0
      %v963 = vmax.f32 %v923, 0.0
      %v964 = vmax.f32 %v925, 0.0
      %v965 = vmax.f32 %v928, 0.0
      %v966 = vmax.f32 %v930, 0.0
      %v967 = vmax.f32 %v933, 0.0
      %v968 = vmax.f32 %v935, 0.0
      %v969 = vadd.f32 %v562, %v937
      %v970 = vadd.f32 %v563, %v938
      %v971 = vadd.f32 %v564, %v939
      %v972 = vadd.f32 %v565, %v940
      %v973 = vadd.f32 %v566, %v941
      %v974 = vadd.f32 %v567, %v942
      %v975 = vadd.f32 %v568, %v943
      %v976 = vadd.f32 %v569, %v944
      %v977 = vadd.f32 %v570, %v945
      %v978 = vadd.f32 %v571, %v946
      %v979 = vadd.f32 %v572, %v947
      %v980 = vadd.f32 %v573, %v948
      %v981 = vadd.f32 %v574, %v949
      %v982 = vadd.f32 %v575, %v950
      %v983 = vadd.f32 %v576, %v951
      %v984 = vadd.f32 %v577, %v952
      %v985 = vadd.f32 %v578, %v953
      %v986 = vadd.f32 %v579, %v954
      %v987 = vadd.f32 %v580, %v955
      %v988 = vadd.f32 %v581, %v956
      %v989 = vadd.f32 %v582, %v957
      %v990 = vadd.f32 %v583, %v958
      %v991 = vadd.f32 %v584, %v959
      %v992 = vadd.f32 %v585, %v960
      %v993 = vadd.f32 %v586, %v961
      %v994 = vadd.f32 %v587, %v962
      %v995 = vadd.f32 %v588, %v963
      %v996 = vadd.f32 %v589, %v964
      %v997 = vadd.f32 %v590, %v965
      %v998 = vadd.f32 %v591, %v966
      %v999 = vadd.f32 %v592, %v967
      %v1000 = vadd.f32 %v593, %v968
      %v1001 = vpack.c.bf16 %v970, %v969
      %v1002 = vpack.c.bf16 %v972, %v971
      %v1003 = vpack.c.bf16 %v974, %v973
      %v1004 = vpack.c.bf16 %v976, %v975
      %v1005 = vpack.c.bf16 %v978, %v977
      %v1006 = vpack.c.bf16 %v980, %v979
      %v1007 = vpack.c.bf16 %v982, %v981
      %v1008 = vpack.c.bf16 %v984, %v983
      %v1009 = vpack.c.bf16 %v986, %v985
      %v1010 = vpack.c.bf16 %v988, %v987
      %v1011 = vpack.c.bf16 %v990, %v989
      %v1012 = vpack.c.bf16 %v992, %v991
      %v1013 = vpack.c.bf16 %v994, %v993
      %v1014 = vpack.c.bf16 %v996, %v995
      %v1015 = vpack.c.bf16 %v998, %v997
      %v1016 = vpack.c.bf16 %v1000, %v999
      %s1017 = scalar_lea.vmem %s2, 64
      %v1018 = vld [vmem:[%s1017] sm:$0xf]
      %v1019 = vld [vmem:[%s1017 + $0x4] sm:$0xf]
      %v1020 = vld [vmem:[%s1017 + $0x8] sm:$0xf]
      %v1021 = vld [vmem:[%s1017 + $0xc] sm:$0xf]
      %v1022 = vld [vmem:[%s1017 + $0x10] sm:$0xf]
      %v1023 = vld [vmem:[%s1017 + $0x14] sm:$0xf]
      %v1024 = vld [vmem:[%s1017 + $0x18] sm:$0xf]
      %v1025 = vld [vmem:[%s1017 + $0x1c] sm:$0xf]
      %v1026 = vld [vmem:[%s1017 + $0x20] sm:$0xf]
      %v1027 = vld [vmem:[%s1017 + $0x24] sm:$0xf]
      %v1028 = vld [vmem:[%s1017 + $0x28] sm:$0xf]
      %v1029 = vld [vmem:[%s1017 + $0x2c] sm:$0xf]
      %v1030 = vld [vmem:[%s1017 + $0x30] sm:$0xf]
      %v1031 = vld [vmem:[%s1017 + $0x34] sm:$0xf]
      %v1032 = vld [vmem:[%s1017 + $0x38] sm:$0xf]
      %v1033 = vld [vmem:[%s1017 + $0x3c] sm:$0xf]
      %s1034 = scalar_lea.vmem %s3, 1
      %v1035 = vld [vmem:[%s1034] sm:$0x1]
      %v1037 = vperm.slane %v1035, 0
      %v1055 = vunpack.c.l.b16 %v1018
      %v1056 = vunpack.c.l.b16 %v1019
      %v1057 = vunpack.c.l.b16 %v1020
      %v1058 = vunpack.c.l.b16 %v1021
      %v1059 = vunpack.c.l.b16 %v1022
      %v1060 = vunpack.c.l.b16 %v1023
      %v1061 = vunpack.c.l.b16 %v1024
      %v1062 = vunpack.c.l.b16 %v1025
      %v1063 = vunpack.c.l.b16 %v1026
      %v1064 = vunpack.c.l.b16 %v1027
      %v1065 = vunpack.c.l.b16 %v1028
      %v1066 = vunpack.c.l.b16 %v1029
      %v1067 = vunpack.c.l.b16 %v1030
      %v1068 = vunpack.c.l.b16 %v1031
      %v1069 = vunpack.c.l.b16 %v1032
      %v1070 = vunpack.c.l.b16 %v1033
      %v1071 = vpack.c.b16 %v1056, %v1055
      %v1072 = vpack.c.b16 %v1058, %v1057
      %v1073 = vpack.c.b16 %v1060, %v1059
      %v1074 = vpack.c.b16 %v1062, %v1061
      %v1075 = vpack.c.b16 %v1064, %v1063
      %v1076 = vpack.c.b16 %v1066, %v1065
      %v1077 = vpack.c.b16 %v1068, %v1067
      %v1078 = vpack.c.b16 %v1070, %v1069
      %1087 = vmatpush.bf16.msra.mxu0 %v1078
      %1088 = vmatpush.bf16.msra.mxu0 %v1077
      %1089 = vmatpush.bf16.msra.mxu0 %v1076
      %1090 = vmatpush.bf16.msra.mxu0 %v1075
      %1091 = vmatpush.bf16.msra.mxu0 %v1074
      %1092 = vmatpush.bf16.msra.mxu0 %v1073
      %1093 = vmatpush.bf16.msra.mxu0 %v1072
      %1094 = vmatpush.bf16.msra.mxu0 %v1071
      %1095 = vmatmul.bf16.gmra.mxu0 %v1001
      %v1096 = vpop.f32.mrf.mxu0
      %v1097 = vadd.f32 %v1037, %v1096
      %v1098 = vpop.f32.mrf.mxu0
      %v1099 = vadd.f32 %v1037, %v1098
      %1100 = vmatmul.bf16.gmra.mxu0 %v1002
      %v1101 = vpop.f32.mrf.mxu0
      %v1102 = vadd.f32 %v1037, %v1101
      %v1103 = vpop.f32.mrf.mxu0
      %v1104 = vadd.f32 %v1037, %v1103
      %1105 = vmatmul.bf16.gmra.mxu0 %v1003
      %v1106 = vpop.f32.mrf.mxu0
      %v1107 = vadd.f32 %v1037, %v1106
      %v1108 = vpop.f32.mrf.mxu0
      %v1109 = vadd.f32 %v1037, %v1108
      %1110 = vmatmul.bf16.gmra.mxu0 %v1004
      %v1111 = vpop.f32.mrf.mxu0
      %v1112 = vadd.f32 %v1037, %v1111
      %v1113 = vpop.f32.mrf.mxu0
      %v1114 = vadd.f32 %v1037, %v1113
      %1115 = vmatmul.bf16.gmra.mxu0 %v1005
      %v1116 = vpop.f32.mrf.mxu0
      %v1117 = vadd.f32 %v1037, %v1116
      %v1118 = vpop.f32.mrf.mxu0
      %v1119 = vadd.f32 %v1037, %v1118
      %1120 = vmatmul.bf16.gmra.mxu0 %v1006
      %v1121 = vpop.f32.mrf.mxu0
      %v1122 = vadd.f32 %v1037, %v1121
      %v1123 = vpop.f32.mrf.mxu0
      %v1124 = vadd.f32 %v1037, %v1123
      %1125 = vmatmul.bf16.gmra.mxu0 %v1007
      %v1126 = vpop.f32.mrf.mxu0
      %v1127 = vadd.f32 %v1037, %v1126
      %v1128 = vpop.f32.mrf.mxu0
      %v1129 = vadd.f32 %v1037, %v1128
      %1130 = vmatmul.bf16.gmra.mxu0 %v1008
      %v1131 = vpop.f32.mrf.mxu0
      %v1132 = vadd.f32 %v1037, %v1131
      %v1133 = vpop.f32.mrf.mxu0
      %v1134 = vadd.f32 %v1037, %v1133
      %1135 = vmatmul.bf16.gmra.mxu0 %v1009
      %v1136 = vpop.f32.mrf.mxu0
      %v1137 = vadd.f32 %v1037, %v1136
      %v1138 = vpop.f32.mrf.mxu0
      %v1139 = vadd.f32 %v1037, %v1138
      %1140 = vmatmul.bf16.gmra.mxu0 %v1010
      %v1141 = vpop.f32.mrf.mxu0
      %v1142 = vadd.f32 %v1037, %v1141
      %v1143 = vpop.f32.mrf.mxu0
      %v1144 = vadd.f32 %v1037, %v1143
      %1145 = vmatmul.bf16.gmra.mxu0 %v1011
      %v1146 = vpop.f32.mrf.mxu0
      %v1147 = vadd.f32 %v1037, %v1146
      %v1148 = vpop.f32.mrf.mxu0
      %v1149 = vadd.f32 %v1037, %v1148
      %1150 = vmatmul.bf16.gmra.mxu0 %v1012
      %v1151 = vpop.f32.mrf.mxu0
      %v1152 = vadd.f32 %v1037, %v1151
      %v1153 = vpop.f32.mrf.mxu0
      %v1154 = vadd.f32 %v1037, %v1153
      %1155 = vmatmul.bf16.gmra.mxu0 %v1013
      %v1156 = vpop.f32.mrf.mxu0
      %v1157 = vadd.f32 %v1037, %v1156
      %v1158 = vpop.f32.mrf.mxu0
      %v1159 = vadd.f32 %v1037, %v1158
      %1160 = vmatmul.bf16.gmra.mxu0 %v1014
      %v1161 = vpop.f32.mrf.mxu0
      %v1162 = vadd.f32 %v1037, %v1161
      %v1163 = vpop.f32.mrf.mxu0
      %v1164 = vadd.f32 %v1037, %v1163
      %1165 = vmatmul.bf16.gmra.mxu0 %v1015
      %v1166 = vpop.f32.mrf.mxu0
      %v1167 = vadd.f32 %v1037, %v1166
      %v1168 = vpop.f32.mrf.mxu0
      %v1169 = vadd.f32 %v1037, %v1168
      %1170 = vmatmul.bf16.gmra.mxu0 %v1016
      %v1171 = vpop.f32.mrf.mxu0
      %v1172 = vadd.f32 %v1037, %v1171
      %v1173 = vpop.f32.mrf.mxu0
      %v1174 = vadd.f32 %v1037, %v1173
      %1175 = vdwg.mxu0
      %v1176 = vpack.c.bf16 %v1099, %v1097
      %v1177 = vpack.c.bf16 %v1104, %v1102
      %v1178 = vpack.c.bf16 %v1109, %v1107
      %v1179 = vpack.c.bf16 %v1114, %v1112
      %v1180 = vpack.c.bf16 %v1119, %v1117
      %v1181 = vpack.c.bf16 %v1124, %v1122
      %v1182 = vpack.c.bf16 %v1129, %v1127
      %v1183 = vpack.c.bf16 %v1134, %v1132
      %v1184 = vpack.c.bf16 %v1139, %v1137
      %v1185 = vpack.c.bf16 %v1144, %v1142
      %v1186 = vpack.c.bf16 %v1149, %v1147
      %v1187 = vpack.c.bf16 %v1154, %v1152
      %v1188 = vpack.c.bf16 %v1159, %v1157
      %v1189 = vpack.c.bf16 %v1164, %v1162
      %v1190 = vpack.c.bf16 %v1169, %v1167
      %v1191 = vpack.c.bf16 %v1174, %v1172
      %s1192 = scalar_lea.vmem %s4, 16
      %v1193 = vld [vmem:[%s1192] sm:$0xf]
      %v1194 = vld [vmem:[%s1192 + $0x4] sm:$0xf]
      %v1195 = vld [vmem:[%s1192 + $0x8] sm:$0xf]
      %v1196 = vld [vmem:[%s1192 + $0xc] sm:$0xf]
      %v1201 = vunpack.c.l.b16 %v1193
      %v1202 = vunpack.c.l.b16 %v1194
      %v1203 = vunpack.c.l.b16 %v1195
      %v1204 = vunpack.c.l.b16 %v1196
      %v1205 = vpack.c.b16 %v1202, %v1201
      %v1206 = vpack.c.b16 %v1204, %v1203
      %v1210 = vsel %vm799, %v1176, 0
      %v1213 = vsel %vm799, %v1177, 0
      %v1216 = vsel %vm799, %v1178, 0
      %v1219 = vsel %vm799, %v1179, 0
      %v1222 = vsel %vm799, %v1180, 0
      %v1225 = vsel %vm799, %v1181, 0
      %v1228 = vsel %vm799, %v1182, 0
      %v1231 = vsel %vm799, %v1183, 0
      %v1234 = vsel %vm799, %v1184, 0
      %v1237 = vsel %vm799, %v1185, 0
      %v1240 = vsel %vm799, %v1186, 0
      %v1243 = vsel %vm799, %v1187, 0
      %v1246 = vsel %vm799, %v1188, 0
      %v1249 = vsel %vm799, %v1189, 0
      %v1252 = vsel %vm799, %v1190, 0
      %v1255 = vsel %vm799, %v1191, 0
      %1257 = vmatpush.bf16.msra.mxu0 0
      %1258 = vmatpush.bf16.msra.mxu0 0
      %1259 = vmatpush.bf16.msra.mxu0 0
      %1260 = vmatpush.bf16.msra.mxu0 0
      %1261 = vmatpush.bf16.msra.mxu0 0
      %1262 = vmatpush.bf16.msra.mxu0 0
      %1263 = vmatpush.bf16.msra.mxu0 %v1206
      %1264 = vmatpush.bf16.msra.mxu0 %v1205
      %1265 = vmatmul.bf16.gmra.mxu0 %v1210
      %v1266 = vpop.f32.mrf.mxu0
      %v1267 = vadd.f32 0.0, %v1266
      %v1268 = vpop.f32.mrf.mxu0
      %v1269 = vadd.f32 0.0, %v1268
      %1270 = vmatmul.bf16.gmra.mxu0 %v1213
      %v1271 = vpop.f32.mrf.mxu0
      %v1272 = vadd.f32 0.0, %v1271
      %v1273 = vpop.f32.mrf.mxu0
      %v1274 = vadd.f32 0.0, %v1273
      %1275 = vmatmul.bf16.gmra.mxu0 %v1216
      %v1276 = vpop.f32.mrf.mxu0
      %v1277 = vadd.f32 0.0, %v1276
      %v1278 = vpop.f32.mrf.mxu0
      %v1279 = vadd.f32 0.0, %v1278
      %1280 = vmatmul.bf16.gmra.mxu0 %v1219
      %v1281 = vpop.f32.mrf.mxu0
      %v1282 = vadd.f32 0.0, %v1281
      %v1283 = vpop.f32.mrf.mxu0
      %v1284 = vadd.f32 0.0, %v1283
      %1285 = vmatmul.bf16.gmra.mxu0 %v1222
      %v1286 = vpop.f32.mrf.mxu0
      %v1287 = vadd.f32 0.0, %v1286
      %v1288 = vpop.f32.mrf.mxu0
      %v1289 = vadd.f32 0.0, %v1288
      %1290 = vmatmul.bf16.gmra.mxu0 %v1225
      %v1291 = vpop.f32.mrf.mxu0
      %v1292 = vadd.f32 0.0, %v1291
      %v1293 = vpop.f32.mrf.mxu0
      %v1294 = vadd.f32 0.0, %v1293
      %1295 = vmatmul.bf16.gmra.mxu0 %v1228
      %v1296 = vpop.f32.mrf.mxu0
      %v1297 = vadd.f32 0.0, %v1296
      %v1298 = vpop.f32.mrf.mxu0
      %v1299 = vadd.f32 0.0, %v1298
      %1300 = vmatmul.bf16.gmra.mxu0 %v1231
      %v1301 = vpop.f32.mrf.mxu0
      %v1302 = vadd.f32 0.0, %v1301
      %v1303 = vpop.f32.mrf.mxu0
      %v1304 = vadd.f32 0.0, %v1303
      %1305 = vmatmul.bf16.gmra.mxu0 %v1234
      %v1306 = vpop.f32.mrf.mxu0
      %v1307 = vadd.f32 0.0, %v1306
      %v1308 = vpop.f32.mrf.mxu0
      %v1309 = vadd.f32 0.0, %v1308
      %1310 = vmatmul.bf16.gmra.mxu0 %v1237
      %v1311 = vpop.f32.mrf.mxu0
      %v1312 = vadd.f32 0.0, %v1311
      %v1313 = vpop.f32.mrf.mxu0
      %v1314 = vadd.f32 0.0, %v1313
      %1315 = vmatmul.bf16.gmra.mxu0 %v1240
      %v1316 = vpop.f32.mrf.mxu0
      %v1317 = vadd.f32 0.0, %v1316
      %v1318 = vpop.f32.mrf.mxu0
      %v1319 = vadd.f32 0.0, %v1318
      %1320 = vmatmul.bf16.gmra.mxu0 %v1243
      %v1321 = vpop.f32.mrf.mxu0
      %v1322 = vadd.f32 0.0, %v1321
      %v1323 = vpop.f32.mrf.mxu0
      %v1324 = vadd.f32 0.0, %v1323
      %1325 = vmatmul.bf16.gmra.mxu0 %v1246
      %v1326 = vpop.f32.mrf.mxu0
      %v1327 = vadd.f32 0.0, %v1326
      %v1328 = vpop.f32.mrf.mxu0
      %v1329 = vadd.f32 0.0, %v1328
      %1330 = vmatmul.bf16.gmra.mxu0 %v1249
      %v1331 = vpop.f32.mrf.mxu0
      %v1332 = vadd.f32 0.0, %v1331
      %v1333 = vpop.f32.mrf.mxu0
      %v1334 = vadd.f32 0.0, %v1333
      %1335 = vmatmul.bf16.gmra.mxu0 %v1252
      %v1336 = vpop.f32.mrf.mxu0
      %v1337 = vadd.f32 0.0, %v1336
      %v1338 = vpop.f32.mrf.mxu0
      %v1339 = vadd.f32 0.0, %v1338
      %1340 = vmatmul.bf16.gmra.mxu0 %v1255
      %v1341 = vpop.f32.mrf.mxu0
      %v1342 = vadd.f32 0.0, %v1341
      %v1343 = vpop.f32.mrf.mxu0
      %v1344 = vadd.f32 0.0, %v1343
      %1345 = vdwg.mxu0
      %v1346 = vmax.f32 %v1267, 0.0
      %v1347 = vmax.f32 %v1269, 0.0
      %v1348 = vmax.f32 %v1272, 0.0
      %v1349 = vmax.f32 %v1274, 0.0
      %v1350 = vmax.f32 %v1277, 0.0
      %v1351 = vmax.f32 %v1279, 0.0
      %v1352 = vmax.f32 %v1282, 0.0
      %v1353 = vmax.f32 %v1284, 0.0
      %v1354 = vmax.f32 %v1287, 0.0
      %v1355 = vmax.f32 %v1289, 0.0
      %v1356 = vmax.f32 %v1292, 0.0
      %v1357 = vmax.f32 %v1294, 0.0
      %v1358 = vmax.f32 %v1297, 0.0
      %v1359 = vmax.f32 %v1299, 0.0
      %v1360 = vmax.f32 %v1302, 0.0
      %v1361 = vmax.f32 %v1304, 0.0
      %v1362 = vmax.f32 %v1307, 0.0
      %v1363 = vmax.f32 %v1309, 0.0
      %v1364 = vmax.f32 %v1312, 0.0
      %v1365 = vmax.f32 %v1314, 0.0
      %v1366 = vmax.f32 %v1317, 0.0
      %v1367 = vmax.f32 %v1319, 0.0
      %v1368 = vmax.f32 %v1322, 0.0
      %v1369 = vmax.f32 %v1324, 0.0
      %v1370 = vmax.f32 %v1327, 0.0
      %v1371 = vmax.f32 %v1329, 0.0
      %v1372 = vmax.f32 %v1332, 0.0
      %v1373 = vmax.f32 %v1334, 0.0
      %v1374 = vmax.f32 %v1337, 0.0
      %v1375 = vmax.f32 %v1339, 0.0
      %v1376 = vmax.f32 %v1342, 0.0
      %v1377 = vmax.f32 %v1344, 0.0
      %v1378 = vadd.f32 %v969, %v1346
      %v1379 = vadd.f32 %v970, %v1347
      %v1380 = vadd.f32 %v971, %v1348
      %v1381 = vadd.f32 %v972, %v1349
      %v1382 = vadd.f32 %v973, %v1350
      %v1383 = vadd.f32 %v974, %v1351
      %v1384 = vadd.f32 %v975, %v1352
      %v1385 = vadd.f32 %v976, %v1353
      %v1386 = vadd.f32 %v977, %v1354
      %v1387 = vadd.f32 %v978, %v1355
      %v1388 = vadd.f32 %v979, %v1356
      %v1389 = vadd.f32 %v980, %v1357
      %v1390 = vadd.f32 %v981, %v1358
      %v1391 = vadd.f32 %v982, %v1359
      %v1392 = vadd.f32 %v983, %v1360
      %v1393 = vadd.f32 %v984, %v1361
      %v1394 = vadd.f32 %v985, %v1362
      %v1395 = vadd.f32 %v986, %v1363
      %v1396 = vadd.f32 %v987, %v1364
      %v1397 = vadd.f32 %v988, %v1365
      %v1398 = vadd.f32 %v989, %v1366
      %v1399 = vadd.f32 %v990, %v1367
      %v1400 = vadd.f32 %v991, %v1368
      %v1401 = vadd.f32 %v992, %v1369
      %v1402 = vadd.f32 %v993, %v1370
      %v1403 = vadd.f32 %v994, %v1371
      %v1404 = vadd.f32 %v995, %v1372
      %v1405 = vadd.f32 %v996, %v1373
      %v1406 = vadd.f32 %v997, %v1374
      %v1407 = vadd.f32 %v998, %v1375
      %v1408 = vadd.f32 %v999, %v1376
      %v1409 = vadd.f32 %v1000, %v1377
      %v1410 = vpack.c.bf16 %v1379, %v1378
      %v1411 = vpack.c.bf16 %v1381, %v1380
      %v1412 = vpack.c.bf16 %v1383, %v1382
      %v1413 = vpack.c.bf16 %v1385, %v1384
      %v1414 = vpack.c.bf16 %v1387, %v1386
      %v1415 = vpack.c.bf16 %v1389, %v1388
      %v1416 = vpack.c.bf16 %v1391, %v1390
      %v1417 = vpack.c.bf16 %v1393, %v1392
      %v1418 = vpack.c.bf16 %v1395, %v1394
      %v1419 = vpack.c.bf16 %v1397, %v1396
      %v1420 = vpack.c.bf16 %v1399, %v1398
      %v1421 = vpack.c.bf16 %v1401, %v1400
      %v1422 = vpack.c.bf16 %v1403, %v1402
      %v1423 = vpack.c.bf16 %v1405, %v1404
      %v1424 = vpack.c.bf16 %v1407, %v1406
      %v1425 = vpack.c.bf16 %v1409, %v1408
      %s1426 = scalar_lea.vmem %s2, 128
      %v1427 = vld [vmem:[%s1426] sm:$0xf]
      %v1428 = vld [vmem:[%s1426 + $0x4] sm:$0xf]
      %v1429 = vld [vmem:[%s1426 + $0x8] sm:$0xf]
      %v1430 = vld [vmem:[%s1426 + $0xc] sm:$0xf]
      %v1431 = vld [vmem:[%s1426 + $0x10] sm:$0xf]
      %v1432 = vld [vmem:[%s1426 + $0x14] sm:$0xf]
      %v1433 = vld [vmem:[%s1426 + $0x18] sm:$0xf]
      %v1434 = vld [vmem:[%s1426 + $0x1c] sm:$0xf]
      %v1435 = vld [vmem:[%s1426 + $0x20] sm:$0xf]
      %v1436 = vld [vmem:[%s1426 + $0x24] sm:$0xf]
      %v1437 = vld [vmem:[%s1426 + $0x28] sm:$0xf]
      %v1438 = vld [vmem:[%s1426 + $0x2c] sm:$0xf]
      %v1439 = vld [vmem:[%s1426 + $0x30] sm:$0xf]
      %v1440 = vld [vmem:[%s1426 + $0x34] sm:$0xf]
      %v1441 = vld [vmem:[%s1426 + $0x38] sm:$0xf]
      %v1442 = vld [vmem:[%s1426 + $0x3c] sm:$0xf]
      %s1443 = scalar_lea.vmem %s3, 2
      %v1444 = vld [vmem:[%s1443] sm:$0x1]
      %v1446 = vperm.slane %v1444, 0
      %v1464 = vunpack.c.l.b16 %v1427
      %v1465 = vunpack.c.l.b16 %v1428
      %v1466 = vunpack.c.l.b16 %v1429
      %v1467 = vunpack.c.l.b16 %v1430
      %v1468 = vunpack.c.l.b16 %v1431
      %v1469 = vunpack.c.l.b16 %v1432
      %v1470 = vunpack.c.l.b16 %v1433
      %v1471 = vunpack.c.l.b16 %v1434
      %v1472 = vunpack.c.l.b16 %v1435
      %v1473 = vunpack.c.l.b16 %v1436
      %v1474 = vunpack.c.l.b16 %v1437
      %v1475 = vunpack.c.l.b16 %v1438
      %v1476 = vunpack.c.l.b16 %v1439
      %v1477 = vunpack.c.l.b16 %v1440
      %v1478 = vunpack.c.l.b16 %v1441
      %v1479 = vunpack.c.l.b16 %v1442
      %v1480 = vpack.c.b16 %v1465, %v1464
      %v1481 = vpack.c.b16 %v1467, %v1466
      %v1482 = vpack.c.b16 %v1469, %v1468
      %v1483 = vpack.c.b16 %v1471, %v1470
      %v1484 = vpack.c.b16 %v1473, %v1472
      %v1485 = vpack.c.b16 %v1475, %v1474
      %v1486 = vpack.c.b16 %v1477, %v1476
      %v1487 = vpack.c.b16 %v1479, %v1478
      %1496 = vmatpush.bf16.msra.mxu0 %v1487
      %1497 = vmatpush.bf16.msra.mxu0 %v1486
      %1498 = vmatpush.bf16.msra.mxu0 %v1485
      %1499 = vmatpush.bf16.msra.mxu0 %v1484
      %1500 = vmatpush.bf16.msra.mxu0 %v1483
      %1501 = vmatpush.bf16.msra.mxu0 %v1482
      %1502 = vmatpush.bf16.msra.mxu0 %v1481
      %1503 = vmatpush.bf16.msra.mxu0 %v1480
      %1504 = vmatmul.bf16.gmra.mxu0 %v1410
      %v1505 = vpop.f32.mrf.mxu0
      %v1506 = vadd.f32 %v1446, %v1505
      %v1507 = vpop.f32.mrf.mxu0
      %v1508 = vadd.f32 %v1446, %v1507
      %1509 = vmatmul.bf16.gmra.mxu0 %v1411
      %v1510 = vpop.f32.mrf.mxu0
      %v1511 = vadd.f32 %v1446, %v1510
      %v1512 = vpop.f32.mrf.mxu0
      %v1513 = vadd.f32 %v1446, %v1512
      %1514 = vmatmul.bf16.gmra.mxu0 %v1412
      %v1515 = vpop.f32.mrf.mxu0
      %v1516 = vadd.f32 %v1446, %v1515
      %v1517 = vpop.f32.mrf.mxu0
      %v1518 = vadd.f32 %v1446, %v1517
      %1519 = vmatmul.bf16.gmra.mxu0 %v1413
      %v1520 = vpop.f32.mrf.mxu0
      %v1521 = vadd.f32 %v1446, %v1520
      %v1522 = vpop.f32.mrf.mxu0
      %v1523 = vadd.f32 %v1446, %v1522
      %1524 = vmatmul.bf16.gmra.mxu0 %v1414
      %v1525 = vpop.f32.mrf.mxu0
      %v1526 = vadd.f32 %v1446, %v1525
      %v1527 = vpop.f32.mrf.mxu0
      %v1528 = vadd.f32 %v1446, %v1527
      %1529 = vmatmul.bf16.gmra.mxu0 %v1415
      %v1530 = vpop.f32.mrf.mxu0
      %v1531 = vadd.f32 %v1446, %v1530
      %v1532 = vpop.f32.mrf.mxu0
      %v1533 = vadd.f32 %v1446, %v1532
      %1534 = vmatmul.bf16.gmra.mxu0 %v1416
      %v1535 = vpop.f32.mrf.mxu0
      %v1536 = vadd.f32 %v1446, %v1535
      %v1537 = vpop.f32.mrf.mxu0
      %v1538 = vadd.f32 %v1446, %v1537
      %1539 = vmatmul.bf16.gmra.mxu0 %v1417
      %v1540 = vpop.f32.mrf.mxu0
      %v1541 = vadd.f32 %v1446, %v1540
      %v1542 = vpop.f32.mrf.mxu0
      %v1543 = vadd.f32 %v1446, %v1542
      %1544 = vmatmul.bf16.gmra.mxu0 %v1418
      %v1545 = vpop.f32.mrf.mxu0
      %v1546 = vadd.f32 %v1446, %v1545
      %v1547 = vpop.f32.mrf.mxu0
      %v1548 = vadd.f32 %v1446, %v1547
      %1549 = vmatmul.bf16.gmra.mxu0 %v1419
      %v1550 = vpop.f32.mrf.mxu0
      %v1551 = vadd.f32 %v1446, %v1550
      %v1552 = vpop.f32.mrf.mxu0
      %v1553 = vadd.f32 %v1446, %v1552
      %1554 = vmatmul.bf16.gmra.mxu0 %v1420
      %v1555 = vpop.f32.mrf.mxu0
      %v1556 = vadd.f32 %v1446, %v1555
      %v1557 = vpop.f32.mrf.mxu0
      %v1558 = vadd.f32 %v1446, %v1557
      %1559 = vmatmul.bf16.gmra.mxu0 %v1421
      %v1560 = vpop.f32.mrf.mxu0
      %v1561 = vadd.f32 %v1446, %v1560
      %v1562 = vpop.f32.mrf.mxu0
      %v1563 = vadd.f32 %v1446, %v1562
      %1564 = vmatmul.bf16.gmra.mxu0 %v1422
      %v1565 = vpop.f32.mrf.mxu0
      %v1566 = vadd.f32 %v1446, %v1565
      %v1567 = vpop.f32.mrf.mxu0
      %v1568 = vadd.f32 %v1446, %v1567
      %1569 = vmatmul.bf16.gmra.mxu0 %v1423
      %v1570 = vpop.f32.mrf.mxu0
      %v1571 = vadd.f32 %v1446, %v1570
      %v1572 = vpop.f32.mrf.mxu0
      %v1573 = vadd.f32 %v1446, %v1572
      %1574 = vmatmul.bf16.gmra.mxu0 %v1424
      %v1575 = vpop.f32.mrf.mxu0
      %v1576 = vadd.f32 %v1446, %v1575
      %v1577 = vpop.f32.mrf.mxu0
      %v1578 = vadd.f32 %v1446, %v1577
      %1579 = vmatmul.bf16.gmra.mxu0 %v1425
      %v1580 = vpop.f32.mrf.mxu0
      %v1581 = vadd.f32 %v1446, %v1580
      %v1582 = vpop.f32.mrf.mxu0
      %v1583 = vadd.f32 %v1446, %v1582
      %1584 = vdwg.mxu0
      %v1585 = vpack.c.bf16 %v1508, %v1506
      %v1586 = vpack.c.bf16 %v1513, %v1511
      %v1587 = vpack.c.bf16 %v1518, %v1516
      %v1588 = vpack.c.bf16 %v1523, %v1521
      %v1589 = vpack.c.bf16 %v1528, %v1526
      %v1590 = vpack.c.bf16 %v1533, %v1531
      %v1591 = vpack.c.bf16 %v1538, %v1536
      %v1592 = vpack.c.bf16 %v1543, %v1541
      %v1593 = vpack.c.bf16 %v1548, %v1546
      %v1594 = vpack.c.bf16 %v1553, %v1551
      %v1595 = vpack.c.bf16 %v1558, %v1556
      %v1596 = vpack.c.bf16 %v1563, %v1561
      %v1597 = vpack.c.bf16 %v1568, %v1566
      %v1598 = vpack.c.bf16 %v1573, %v1571
      %v1599 = vpack.c.bf16 %v1578, %v1576
      %v1600 = vpack.c.bf16 %v1583, %v1581
      %s1601 = scalar_lea.vmem %s4, 32
      %v1602 = vld [vmem:[%s1601] sm:$0xf]
      %v1603 = vld [vmem:[%s1601 + $0x4] sm:$0xf]
      %v1604 = vld [vmem:[%s1601 + $0x8] sm:$0xf]
      %v1605 = vld [vmem:[%s1601 + $0xc] sm:$0xf]
      %v1610 = vunpack.c.l.b16 %v1602
      %v1611 = vunpack.c.l.b16 %v1603
      %v1612 = vunpack.c.l.b16 %v1604
      %v1613 = vunpack.c.l.b16 %v1605
      %v1614 = vpack.c.b16 %v1611, %v1610
      %v1615 = vpack.c.b16 %v1613, %v1612
      %v1619 = vsel %vm799, %v1585, 0
      %v1622 = vsel %vm799, %v1586, 0
      %v1625 = vsel %vm799, %v1587, 0
      %v1628 = vsel %vm799, %v1588, 0
      %v1631 = vsel %vm799, %v1589, 0
      %v1634 = vsel %vm799, %v1590, 0
      %v1637 = vsel %vm799, %v1591, 0
      %v1640 = vsel %vm799, %v1592, 0
      %v1643 = vsel %vm799, %v1593, 0
      %v1646 = vsel %vm799, %v1594, 0
      %v1649 = vsel %vm799, %v1595, 0
      %v1652 = vsel %vm799, %v1596, 0
      %v1655 = vsel %vm799, %v1597, 0
      %v1658 = vsel %vm799, %v1598, 0
      %v1661 = vsel %vm799, %v1599, 0
      %v1664 = vsel %vm799, %v1600, 0
      %1666 = vmatpush.bf16.msra.mxu0 0
      %1667 = vmatpush.bf16.msra.mxu0 0
      %1668 = vmatpush.bf16.msra.mxu0 0
      %1669 = vmatpush.bf16.msra.mxu0 0
      %1670 = vmatpush.bf16.msra.mxu0 0
      %1671 = vmatpush.bf16.msra.mxu0 0
      %1672 = vmatpush.bf16.msra.mxu0 %v1615
      %1673 = vmatpush.bf16.msra.mxu0 %v1614
      %1674 = vmatmul.bf16.gmra.mxu0 %v1619
      %v1675 = vpop.f32.mrf.mxu0
      %v1676 = vadd.f32 0.0, %v1675
      %v1677 = vpop.f32.mrf.mxu0
      %v1678 = vadd.f32 0.0, %v1677
      %1679 = vmatmul.bf16.gmra.mxu0 %v1622
      %v1680 = vpop.f32.mrf.mxu0
      %v1681 = vadd.f32 0.0, %v1680
      %v1682 = vpop.f32.mrf.mxu0
      %v1683 = vadd.f32 0.0, %v1682
      %1684 = vmatmul.bf16.gmra.mxu0 %v1625
      %v1685 = vpop.f32.mrf.mxu0
      %v1686 = vadd.f32 0.0, %v1685
      %v1687 = vpop.f32.mrf.mxu0
      %v1688 = vadd.f32 0.0, %v1687
      %1689 = vmatmul.bf16.gmra.mxu0 %v1628
      %v1690 = vpop.f32.mrf.mxu0
      %v1691 = vadd.f32 0.0, %v1690
      %v1692 = vpop.f32.mrf.mxu0
      %v1693 = vadd.f32 0.0, %v1692
      %1694 = vmatmul.bf16.gmra.mxu0 %v1631
      %v1695 = vpop.f32.mrf.mxu0
      %v1696 = vadd.f32 0.0, %v1695
      %v1697 = vpop.f32.mrf.mxu0
      %v1698 = vadd.f32 0.0, %v1697
      %1699 = vmatmul.bf16.gmra.mxu0 %v1634
      %v1700 = vpop.f32.mrf.mxu0
      %v1701 = vadd.f32 0.0, %v1700
      %v1702 = vpop.f32.mrf.mxu0
      %v1703 = vadd.f32 0.0, %v1702
      %1704 = vmatmul.bf16.gmra.mxu0 %v1637
      %v1705 = vpop.f32.mrf.mxu0
      %v1706 = vadd.f32 0.0, %v1705
      %v1707 = vpop.f32.mrf.mxu0
      %v1708 = vadd.f32 0.0, %v1707
      %1709 = vmatmul.bf16.gmra.mxu0 %v1640
      %v1710 = vpop.f32.mrf.mxu0
      %v1711 = vadd.f32 0.0, %v1710
      %v1712 = vpop.f32.mrf.mxu0
      %v1713 = vadd.f32 0.0, %v1712
      %1714 = vmatmul.bf16.gmra.mxu0 %v1643
      %v1715 = vpop.f32.mrf.mxu0
      %v1716 = vadd.f32 0.0, %v1715
      %v1717 = vpop.f32.mrf.mxu0
      %v1718 = vadd.f32 0.0, %v1717
      %1719 = vmatmul.bf16.gmra.mxu0 %v1646
      %v1720 = vpop.f32.mrf.mxu0
      %v1721 = vadd.f32 0.0, %v1720
      %v1722 = vpop.f32.mrf.mxu0
      %v1723 = vadd.f32 0.0, %v1722
      %1724 = vmatmul.bf16.gmra.mxu0 %v1649
      %v1725 = vpop.f32.mrf.mxu0
      %v1726 = vadd.f32 0.0, %v1725
      %v1727 = vpop.f32.mrf.mxu0
      %v1728 = vadd.f32 0.0, %v1727
      %1729 = vmatmul.bf16.gmra.mxu0 %v1652
      %v1730 = vpop.f32.mrf.mxu0
      %v1731 = vadd.f32 0.0, %v1730
      %v1732 = vpop.f32.mrf.mxu0
      %v1733 = vadd.f32 0.0, %v1732
      %1734 = vmatmul.bf16.gmra.mxu0 %v1655
      %v1735 = vpop.f32.mrf.mxu0
      %v1736 = vadd.f32 0.0, %v1735
      %v1737 = vpop.f32.mrf.mxu0
      %v1738 = vadd.f32 0.0, %v1737
      %1739 = vmatmul.bf16.gmra.mxu0 %v1658
      %v1740 = vpop.f32.mrf.mxu0
      %v1741 = vadd.f32 0.0, %v1740
      %v1742 = vpop.f32.mrf.mxu0
      %v1743 = vadd.f32 0.0, %v1742
      %1744 = vmatmul.bf16.gmra.mxu0 %v1661
      %v1745 = vpop.f32.mrf.mxu0
      %v1746 = vadd.f32 0.0, %v1745
      %v1747 = vpop.f32.mrf.mxu0
      %v1748 = vadd.f32 0.0, %v1747
      %1749 = vmatmul.bf16.gmra.mxu0 %v1664
      %v1750 = vpop.f32.mrf.mxu0
      %v1751 = vadd.f32 0.0, %v1750
      %v1752 = vpop.f32.mrf.mxu0
      %v1753 = vadd.f32 0.0, %v1752
      %1754 = vdwg.mxu0
      %v1755 = vmax.f32 %v1676, 0.0
      %v1756 = vmax.f32 %v1678, 0.0
      %v1757 = vmax.f32 %v1681, 0.0
      %v1758 = vmax.f32 %v1683, 0.0
      %v1759 = vmax.f32 %v1686, 0.0
      %v1760 = vmax.f32 %v1688, 0.0
      %v1761 = vmax.f32 %v1691, 0.0
      %v1762 = vmax.f32 %v1693, 0.0
      %v1763 = vmax.f32 %v1696, 0.0
      %v1764 = vmax.f32 %v1698, 0.0
      %v1765 = vmax.f32 %v1701, 0.0
      %v1766 = vmax.f32 %v1703, 0.0
      %v1767 = vmax.f32 %v1706, 0.0
      %v1768 = vmax.f32 %v1708, 0.0
      %v1769 = vmax.f32 %v1711, 0.0
      %v1770 = vmax.f32 %v1713, 0.0
      %v1771 = vmax.f32 %v1716, 0.0
      %v1772 = vmax.f32 %v1718, 0.0
      %v1773 = vmax.f32 %v1721, 0.0
      %v1774 = vmax.f32 %v1723, 0.0
      %v1775 = vmax.f32 %v1726, 0.0
      %v1776 = vmax.f32 %v1728, 0.0
      %v1777 = vmax.f32 %v1731, 0.0
      %v1778 = vmax.f32 %v1733, 0.0
      %v1779 = vmax.f32 %v1736, 0.0
      %v1780 = vmax.f32 %v1738, 0.0
      %v1781 = vmax.f32 %v1741, 0.0
      %v1782 = vmax.f32 %v1743, 0.0
      %v1783 = vmax.f32 %v1746, 0.0
      %v1784 = vmax.f32 %v1748, 0.0
      %v1785 = vmax.f32 %v1751, 0.0
      %v1786 = vmax.f32 %v1753, 0.0
      %v1787 = vadd.f32 %v1378, %v1755
      %v1788 = vadd.f32 %v1379, %v1756
      %v1789 = vadd.f32 %v1380, %v1757
      %v1790 = vadd.f32 %v1381, %v1758
      %v1791 = vadd.f32 %v1382, %v1759
      %v1792 = vadd.f32 %v1383, %v1760
      %v1793 = vadd.f32 %v1384, %v1761
      %v1794 = vadd.f32 %v1385, %v1762
      %v1795 = vadd.f32 %v1386, %v1763
      %v1796 = vadd.f32 %v1387, %v1764
      %v1797 = vadd.f32 %v1388, %v1765
      %v1798 = vadd.f32 %v1389, %v1766
      %v1799 = vadd.f32 %v1390, %v1767
      %v1800 = vadd.f32 %v1391, %v1768
      %v1801 = vadd.f32 %v1392, %v1769
      %v1802 = vadd.f32 %v1393, %v1770
      %v1803 = vadd.f32 %v1394, %v1771
      %v1804 = vadd.f32 %v1395, %v1772
      %v1805 = vadd.f32 %v1396, %v1773
      %v1806 = vadd.f32 %v1397, %v1774
      %v1807 = vadd.f32 %v1398, %v1775
      %v1808 = vadd.f32 %v1399, %v1776
      %v1809 = vadd.f32 %v1400, %v1777
      %v1810 = vadd.f32 %v1401, %v1778
      %v1811 = vadd.f32 %v1402, %v1779
      %v1812 = vadd.f32 %v1403, %v1780
      %v1813 = vadd.f32 %v1404, %v1781
      %v1814 = vadd.f32 %v1405, %v1782
      %v1815 = vadd.f32 %v1406, %v1783
      %v1816 = vadd.f32 %v1407, %v1784
      %v1817 = vadd.f32 %v1408, %v1785
      %v1818 = vadd.f32 %v1409, %v1786
      %v1819 = vpack.c.bf16 %v1788, %v1787
      %v1820 = vpack.c.bf16 %v1790, %v1789
      %v1821 = vpack.c.bf16 %v1792, %v1791
      %v1822 = vpack.c.bf16 %v1794, %v1793
      %v1823 = vpack.c.bf16 %v1796, %v1795
      %v1824 = vpack.c.bf16 %v1798, %v1797
      %v1825 = vpack.c.bf16 %v1800, %v1799
      %v1826 = vpack.c.bf16 %v1802, %v1801
      %v1827 = vpack.c.bf16 %v1804, %v1803
      %v1828 = vpack.c.bf16 %v1806, %v1805
      %v1829 = vpack.c.bf16 %v1808, %v1807
      %v1830 = vpack.c.bf16 %v1810, %v1809
      %v1831 = vpack.c.bf16 %v1812, %v1811
      %v1832 = vpack.c.bf16 %v1814, %v1813
      %v1833 = vpack.c.bf16 %v1816, %v1815
      %v1834 = vpack.c.bf16 %v1818, %v1817
      %s1835 = scalar_lea.vmem %s2, 192
      %v1836 = vld [vmem:[%s1835] sm:$0xf]
      %v1837 = vld [vmem:[%s1835 + $0x4] sm:$0xf]
      %v1838 = vld [vmem:[%s1835 + $0x8] sm:$0xf]
      %v1839 = vld [vmem:[%s1835 + $0xc] sm:$0xf]
      %v1840 = vld [vmem:[%s1835 + $0x10] sm:$0xf]
      %v1841 = vld [vmem:[%s1835 + $0x14] sm:$0xf]
      %v1842 = vld [vmem:[%s1835 + $0x18] sm:$0xf]
      %v1843 = vld [vmem:[%s1835 + $0x1c] sm:$0xf]
      %v1844 = vld [vmem:[%s1835 + $0x20] sm:$0xf]
      %v1845 = vld [vmem:[%s1835 + $0x24] sm:$0xf]
      %v1846 = vld [vmem:[%s1835 + $0x28] sm:$0xf]
      %v1847 = vld [vmem:[%s1835 + $0x2c] sm:$0xf]
      %v1848 = vld [vmem:[%s1835 + $0x30] sm:$0xf]
      %v1849 = vld [vmem:[%s1835 + $0x34] sm:$0xf]
      %v1850 = vld [vmem:[%s1835 + $0x38] sm:$0xf]
      %v1851 = vld [vmem:[%s1835 + $0x3c] sm:$0xf]
      %s1852 = scalar_lea.vmem %s3, 3
      %v1853 = vld [vmem:[%s1852] sm:$0x1]
      %v1855 = vperm.slane %v1853, 0
      %v1873 = vunpack.c.l.b16 %v1836
      %v1874 = vunpack.c.l.b16 %v1837
      %v1875 = vunpack.c.l.b16 %v1838
      %v1876 = vunpack.c.l.b16 %v1839
      %v1877 = vunpack.c.l.b16 %v1840
      %v1878 = vunpack.c.l.b16 %v1841
      %v1879 = vunpack.c.l.b16 %v1842
      %v1880 = vunpack.c.l.b16 %v1843
      %v1881 = vunpack.c.l.b16 %v1844
      %v1882 = vunpack.c.l.b16 %v1845
      %v1883 = vunpack.c.l.b16 %v1846
      %v1884 = vunpack.c.l.b16 %v1847
      %v1885 = vunpack.c.l.b16 %v1848
      %v1886 = vunpack.c.l.b16 %v1849
      %v1887 = vunpack.c.l.b16 %v1850
      %v1888 = vunpack.c.l.b16 %v1851
      %v1889 = vpack.c.b16 %v1874, %v1873
      %v1890 = vpack.c.b16 %v1876, %v1875
      %v1891 = vpack.c.b16 %v1878, %v1877
      %v1892 = vpack.c.b16 %v1880, %v1879
      %v1893 = vpack.c.b16 %v1882, %v1881
      %v1894 = vpack.c.b16 %v1884, %v1883
      %v1895 = vpack.c.b16 %v1886, %v1885
      %v1896 = vpack.c.b16 %v1888, %v1887
      %1905 = vmatpush.bf16.msra.mxu0 %v1896
      %1906 = vmatpush.bf16.msra.mxu0 %v1895
      %1907 = vmatpush.bf16.msra.mxu0 %v1894
      %1908 = vmatpush.bf16.msra.mxu0 %v1893
      %1909 = vmatpush.bf16.msra.mxu0 %v1892
      %1910 = vmatpush.bf16.msra.mxu0 %v1891
      %1911 = vmatpush.bf16.msra.mxu0 %v1890
      %1912 = vmatpush.bf16.msra.mxu0 %v1889
      %1913 = vmatmul.bf16.gmra.mxu0 %v1819
      %v1914 = vpop.f32.mrf.mxu0
      %v1915 = vadd.f32 %v1855, %v1914
      %v1916 = vpop.f32.mrf.mxu0
      %v1917 = vadd.f32 %v1855, %v1916
      %1918 = vmatmul.bf16.gmra.mxu0 %v1820
      %v1919 = vpop.f32.mrf.mxu0
      %v1920 = vadd.f32 %v1855, %v1919
      %v1921 = vpop.f32.mrf.mxu0
      %v1922 = vadd.f32 %v1855, %v1921
      %1923 = vmatmul.bf16.gmra.mxu0 %v1821
      %v1924 = vpop.f32.mrf.mxu0
      %v1925 = vadd.f32 %v1855, %v1924
      %v1926 = vpop.f32.mrf.mxu0
      %v1927 = vadd.f32 %v1855, %v1926
      %1928 = vmatmul.bf16.gmra.mxu0 %v1822
      %v1929 = vpop.f32.mrf.mxu0
      %v1930 = vadd.f32 %v1855, %v1929
      %v1931 = vpop.f32.mrf.mxu0
      %v1932 = vadd.f32 %v1855, %v1931
      %1933 = vmatmul.bf16.gmra.mxu0 %v1823
      %v1934 = vpop.f32.mrf.mxu0
      %v1935 = vadd.f32 %v1855, %v1934
      %v1936 = vpop.f32.mrf.mxu0
      %v1937 = vadd.f32 %v1855, %v1936
      %1938 = vmatmul.bf16.gmra.mxu0 %v1824
      %v1939 = vpop.f32.mrf.mxu0
      %v1940 = vadd.f32 %v1855, %v1939
      %v1941 = vpop.f32.mrf.mxu0
      %v1942 = vadd.f32 %v1855, %v1941
      %1943 = vmatmul.bf16.gmra.mxu0 %v1825
      %v1944 = vpop.f32.mrf.mxu0
      %v1945 = vadd.f32 %v1855, %v1944
      %v1946 = vpop.f32.mrf.mxu0
      %v1947 = vadd.f32 %v1855, %v1946
      %1948 = vmatmul.bf16.gmra.mxu0 %v1826
      %v1949 = vpop.f32.mrf.mxu0
      %v1950 = vadd.f32 %v1855, %v1949
      %v1951 = vpop.f32.mrf.mxu0
      %v1952 = vadd.f32 %v1855, %v1951
      %1953 = vmatmul.bf16.gmra.mxu0 %v1827
      %v1954 = vpop.f32.mrf.mxu0
      %v1955 = vadd.f32 %v1855, %v1954
      %v1956 = vpop.f32.mrf.mxu0
      %v1957 = vadd.f32 %v1855, %v1956
      %1958 = vmatmul.bf16.gmra.mxu0 %v1828
      %v1959 = vpop.f32.mrf.mxu0
      %v1960 = vadd.f32 %v1855, %v1959
      %v1961 = vpop.f32.mrf.mxu0
      %v1962 = vadd.f32 %v1855, %v1961
      %1963 = vmatmul.bf16.gmra.mxu0 %v1829
      %v1964 = vpop.f32.mrf.mxu0
      %v1965 = vadd.f32 %v1855, %v1964
      %v1966 = vpop.f32.mrf.mxu0
      %v1967 = vadd.f32 %v1855, %v1966
      %1968 = vmatmul.bf16.gmra.mxu0 %v1830
      %v1969 = vpop.f32.mrf.mxu0
      %v1970 = vadd.f32 %v1855, %v1969
      %v1971 = vpop.f32.mrf.mxu0
      %v1972 = vadd.f32 %v1855, %v1971
      %1973 = vmatmul.bf16.gmra.mxu0 %v1831
      %v1974 = vpop.f32.mrf.mxu0
      %v1975 = vadd.f32 %v1855, %v1974
      %v1976 = vpop.f32.mrf.mxu0
      %v1977 = vadd.f32 %v1855, %v1976
      %1978 = vmatmul.bf16.gmra.mxu0 %v1832
      %v1979 = vpop.f32.mrf.mxu0
      %v1980 = vadd.f32 %v1855, %v1979
      %v1981 = vpop.f32.mrf.mxu0
      %v1982 = vadd.f32 %v1855, %v1981
      %1983 = vmatmul.bf16.gmra.mxu0 %v1833
      %v1984 = vpop.f32.mrf.mxu0
      %v1985 = vadd.f32 %v1855, %v1984
      %v1986 = vpop.f32.mrf.mxu0
      %v1987 = vadd.f32 %v1855, %v1986
      %1988 = vmatmul.bf16.gmra.mxu0 %v1834
      %v1989 = vpop.f32.mrf.mxu0
      %v1990 = vadd.f32 %v1855, %v1989
      %v1991 = vpop.f32.mrf.mxu0
      %v1992 = vadd.f32 %v1855, %v1991
      %1993 = vdwg.mxu0
      %v1994 = vpack.c.bf16 %v1917, %v1915
      %v1995 = vpack.c.bf16 %v1922, %v1920
      %v1996 = vpack.c.bf16 %v1927, %v1925
      %v1997 = vpack.c.bf16 %v1932, %v1930
      %v1998 = vpack.c.bf16 %v1937, %v1935
      %v1999 = vpack.c.bf16 %v1942, %v1940
      %v2000 = vpack.c.bf16 %v1947, %v1945
      %v2001 = vpack.c.bf16 %v1952, %v1950
      %v2002 = vpack.c.bf16 %v1957, %v1955
      %v2003 = vpack.c.bf16 %v1962, %v1960
      %v2004 = vpack.c.bf16 %v1967, %v1965
      %v2005 = vpack.c.bf16 %v1972, %v1970
      %v2006 = vpack.c.bf16 %v1977, %v1975
      %v2007 = vpack.c.bf16 %v1982, %v1980
      %v2008 = vpack.c.bf16 %v1987, %v1985
      %v2009 = vpack.c.bf16 %v1992, %v1990
      %s2010 = scalar_lea.vmem %s4, 48
      %v2011 = vld [vmem:[%s2010] sm:$0xf]
      %v2012 = vld [vmem:[%s2010 + $0x4] sm:$0xf]
      %v2013 = vld [vmem:[%s2010 + $0x8] sm:$0xf]
      %v2014 = vld [vmem:[%s2010 + $0xc] sm:$0xf]
      %v2019 = vunpack.c.l.b16 %v2011
      %v2020 = vunpack.c.l.b16 %v2012
      %v2021 = vunpack.c.l.b16 %v2013
      %v2022 = vunpack.c.l.b16 %v2014
      %v2023 = vpack.c.b16 %v2020, %v2019
      %v2024 = vpack.c.b16 %v2022, %v2021
      %v2028 = vsel %vm799, %v1994, 0
      %v2031 = vsel %vm799, %v1995, 0
      %v2034 = vsel %vm799, %v1996, 0
      %v2037 = vsel %vm799, %v1997, 0
      %v2040 = vsel %vm799, %v1998, 0
      %v2043 = vsel %vm799, %v1999, 0
      %v2046 = vsel %vm799, %v2000, 0
      %v2049 = vsel %vm799, %v2001, 0
      %v2052 = vsel %vm799, %v2002, 0
      %v2055 = vsel %vm799, %v2003, 0
      %v2058 = vsel %vm799, %v2004, 0
      %v2061 = vsel %vm799, %v2005, 0
      %v2064 = vsel %vm799, %v2006, 0
      %v2067 = vsel %vm799, %v2007, 0
      %v2070 = vsel %vm799, %v2008, 0
      %v2073 = vsel %vm799, %v2009, 0
      %2075 = vmatpush.bf16.msra.mxu0 0
      %2076 = vmatpush.bf16.msra.mxu0 0
      %2077 = vmatpush.bf16.msra.mxu0 0
      %2078 = vmatpush.bf16.msra.mxu0 0
      %2079 = vmatpush.bf16.msra.mxu0 0
      %2080 = vmatpush.bf16.msra.mxu0 0
      %2081 = vmatpush.bf16.msra.mxu0 %v2024
      %2082 = vmatpush.bf16.msra.mxu0 %v2023
      %2083 = vmatmul.bf16.gmra.mxu0 %v2028
      %v2084 = vpop.f32.mrf.mxu0
      %v2085 = vadd.f32 0.0, %v2084
      %v2086 = vpop.f32.mrf.mxu0
      %v2087 = vadd.f32 0.0, %v2086
      %2088 = vmatmul.bf16.gmra.mxu0 %v2031
      %v2089 = vpop.f32.mrf.mxu0
      %v2090 = vadd.f32 0.0, %v2089
      %v2091 = vpop.f32.mrf.mxu0
      %v2092 = vadd.f32 0.0, %v2091
      %2093 = vmatmul.bf16.gmra.mxu0 %v2034
      %v2094 = vpop.f32.mrf.mxu0
      %v2095 = vadd.f32 0.0, %v2094
      %v2096 = vpop.f32.mrf.mxu0
      %v2097 = vadd.f32 0.0, %v2096
      %2098 = vmatmul.bf16.gmra.mxu0 %v2037
      %v2099 = vpop.f32.mrf.mxu0
      %v2100 = vadd.f32 0.0, %v2099
      %v2101 = vpop.f32.mrf.mxu0
      %v2102 = vadd.f32 0.0, %v2101
      %2103 = vmatmul.bf16.gmra.mxu0 %v2040
      %v2104 = vpop.f32.mrf.mxu0
      %v2105 = vadd.f32 0.0, %v2104
      %v2106 = vpop.f32.mrf.mxu0
      %v2107 = vadd.f32 0.0, %v2106
      %2108 = vmatmul.bf16.gmra.mxu0 %v2043
      %v2109 = vpop.f32.mrf.mxu0
      %v2110 = vadd.f32 0.0, %v2109
      %v2111 = vpop.f32.mrf.mxu0
      %v2112 = vadd.f32 0.0, %v2111
      %2113 = vmatmul.bf16.gmra.mxu0 %v2046
      %v2114 = vpop.f32.mrf.mxu0
      %v2115 = vadd.f32 0.0, %v2114
      %v2116 = vpop.f32.mrf.mxu0
      %v2117 = vadd.f32 0.0, %v2116
      %2118 = vmatmul.bf16.gmra.mxu0 %v2049
      %v2119 = vpop.f32.mrf.mxu0
      %v2120 = vadd.f32 0.0, %v2119
      %v2121 = vpop.f32.mrf.mxu0
      %v2122 = vadd.f32 0.0, %v2121
      %2123 = vmatmul.bf16.gmra.mxu0 %v2052
      %v2124 = vpop.f32.mrf.mxu0
      %v2125 = vadd.f32 0.0, %v2124
      %v2126 = vpop.f32.mrf.mxu0
      %v2127 = vadd.f32 0.0, %v2126
      %2128 = vmatmul.bf16.gmra.mxu0 %v2055
      %v2129 = vpop.f32.mrf.mxu0
      %v2130 = vadd.f32 0.0, %v2129
      %v2131 = vpop.f32.mrf.mxu0
      %v2132 = vadd.f32 0.0, %v2131
      %2133 = vmatmul.bf16.gmra.mxu0 %v2058
      %v2134 = vpop.f32.mrf.mxu0
      %v2135 = vadd.f32 0.0, %v2134
      %v2136 = vpop.f32.mrf.mxu0
      %v2137 = vadd.f32 0.0, %v2136
      %2138 = vmatmul.bf16.gmra.mxu0 %v2061
      %v2139 = vpop.f32.mrf.mxu0
      %v2140 = vadd.f32 0.0, %v2139
      %v2141 = vpop.f32.mrf.mxu0
      %v2142 = vadd.f32 0.0, %v2141
      %2143 = vmatmul.bf16.gmra.mxu0 %v2064
      %v2144 = vpop.f32.mrf.mxu0
      %v2145 = vadd.f32 0.0, %v2144
      %v2146 = vpop.f32.mrf.mxu0
      %v2147 = vadd.f32 0.0, %v2146
      %2148 = vmatmul.bf16.gmra.mxu0 %v2067
      %v2149 = vpop.f32.mrf.mxu0
      %v2150 = vadd.f32 0.0, %v2149
      %v2151 = vpop.f32.mrf.mxu0
      %v2152 = vadd.f32 0.0, %v2151
      %2153 = vmatmul.bf16.gmra.mxu0 %v2070
      %v2154 = vpop.f32.mrf.mxu0
      %v2155 = vadd.f32 0.0, %v2154
      %v2156 = vpop.f32.mrf.mxu0
      %v2157 = vadd.f32 0.0, %v2156
      %2158 = vmatmul.bf16.gmra.mxu0 %v2073
      %v2159 = vpop.f32.mrf.mxu0
      %v2160 = vadd.f32 0.0, %v2159
      %v2161 = vpop.f32.mrf.mxu0
      %v2162 = vadd.f32 0.0, %v2161
      %2163 = vdwg.mxu0
      %v2164 = vmax.f32 %v2085, 0.0
      %v2165 = vmax.f32 %v2087, 0.0
      %v2166 = vmax.f32 %v2090, 0.0
      %v2167 = vmax.f32 %v2092, 0.0
      %v2168 = vmax.f32 %v2095, 0.0
      %v2169 = vmax.f32 %v2097, 0.0
      %v2170 = vmax.f32 %v2100, 0.0
      %v2171 = vmax.f32 %v2102, 0.0
      %v2172 = vmax.f32 %v2105, 0.0
      %v2173 = vmax.f32 %v2107, 0.0
      %v2174 = vmax.f32 %v2110, 0.0
      %v2175 = vmax.f32 %v2112, 0.0
      %v2176 = vmax.f32 %v2115, 0.0
      %v2177 = vmax.f32 %v2117, 0.0
      %v2178 = vmax.f32 %v2120, 0.0
      %v2179 = vmax.f32 %v2122, 0.0
      %v2180 = vmax.f32 %v2125, 0.0
      %v2181 = vmax.f32 %v2127, 0.0
      %v2182 = vmax.f32 %v2130, 0.0
      %v2183 = vmax.f32 %v2132, 0.0
      %v2184 = vmax.f32 %v2135, 0.0
      %v2185 = vmax.f32 %v2137, 0.0
      %v2186 = vmax.f32 %v2140, 0.0
      %v2187 = vmax.f32 %v2142, 0.0
      %v2188 = vmax.f32 %v2145, 0.0
      %v2189 = vmax.f32 %v2147, 0.0
      %v2190 = vmax.f32 %v2150, 0.0
      %v2191 = vmax.f32 %v2152, 0.0
      %v2192 = vmax.f32 %v2155, 0.0
      %v2193 = vmax.f32 %v2157, 0.0
      %v2194 = vmax.f32 %v2160, 0.0
      %v2195 = vmax.f32 %v2162, 0.0
      %v2196 = vadd.f32 %v1787, %v2164
      %v2197 = vadd.f32 %v1788, %v2165
      %v2198 = vadd.f32 %v1789, %v2166
      %v2199 = vadd.f32 %v1790, %v2167
      %v2200 = vadd.f32 %v1791, %v2168
      %v2201 = vadd.f32 %v1792, %v2169
      %v2202 = vadd.f32 %v1793, %v2170
      %v2203 = vadd.f32 %v1794, %v2171
      %v2204 = vadd.f32 %v1795, %v2172
      %v2205 = vadd.f32 %v1796, %v2173
      %v2206 = vadd.f32 %v1797, %v2174
      %v2207 = vadd.f32 %v1798, %v2175
      %v2208 = vadd.f32 %v1799, %v2176
      %v2209 = vadd.f32 %v1800, %v2177
      %v2210 = vadd.f32 %v1801, %v2178
      %v2211 = vadd.f32 %v1802, %v2179
      %v2212 = vadd.f32 %v1803, %v2180
      %v2213 = vadd.f32 %v1804, %v2181
      %v2214 = vadd.f32 %v1805, %v2182
      %v2215 = vadd.f32 %v1806, %v2183
      %v2216 = vadd.f32 %v1807, %v2184
      %v2217 = vadd.f32 %v1808, %v2185
      %v2218 = vadd.f32 %v1809, %v2186
      %v2219 = vadd.f32 %v1810, %v2187
      %v2220 = vadd.f32 %v1811, %v2188
      %v2221 = vadd.f32 %v1812, %v2189
      %v2222 = vadd.f32 %v1813, %v2190
      %v2223 = vadd.f32 %v1814, %v2191
      %v2224 = vadd.f32 %v1815, %v2192
      %v2225 = vadd.f32 %v1816, %v2193
      %v2226 = vadd.f32 %v1817, %v2194
      %v2227 = vadd.f32 %v1818, %v2195
      %v2228 = vpack.c.bf16 %v2197, %v2196
      %v2229 = vpack.c.bf16 %v2199, %v2198
      %v2230 = vpack.c.bf16 %v2201, %v2200
      %v2231 = vpack.c.bf16 %v2203, %v2202
      %v2232 = vpack.c.bf16 %v2205, %v2204
      %v2233 = vpack.c.bf16 %v2207, %v2206
      %v2234 = vpack.c.bf16 %v2209, %v2208
      %v2235 = vpack.c.bf16 %v2211, %v2210
      %v2236 = vpack.c.bf16 %v2213, %v2212
      %v2237 = vpack.c.bf16 %v2215, %v2214
      %v2238 = vpack.c.bf16 %v2217, %v2216
      %v2239 = vpack.c.bf16 %v2219, %v2218
      %v2240 = vpack.c.bf16 %v2221, %v2220
      %v2241 = vpack.c.bf16 %v2223, %v2222
      %v2242 = vpack.c.bf16 %v2225, %v2224
      %v2243 = vpack.c.bf16 %v2227, %v2226
      %v2244 = vld [vmem:[%s5] sm:$0xf]
      %v2245 = vld [vmem:[%s5 + $0x4] sm:$0xf]
      %v2246 = vld [vmem:[%s5 + $0x8] sm:$0xf]
      %v2247 = vld [vmem:[%s5 + $0xc] sm:$0xf]
      %v2248 = vld [vmem:[%s5 + $0x10] sm:$0xf]
      %v2249 = vld [vmem:[%s5 + $0x14] sm:$0xf]
      %v2250 = vld [vmem:[%s5 + $0x18] sm:$0xf]
      %v2251 = vld [vmem:[%s5 + $0x1c] sm:$0xf]
      %v2252 = vld [vmem:[%s5 + $0x20] sm:$0xf]
      %v2253 = vld [vmem:[%s5 + $0x24] sm:$0xf]
      %v2254 = vld [vmem:[%s5 + $0x28] sm:$0xf]
      %v2255 = vld [vmem:[%s5 + $0x2c] sm:$0xf]
      %v2256 = vld [vmem:[%s5 + $0x30] sm:$0xf]
      %v2257 = vld [vmem:[%s5 + $0x34] sm:$0xf]
      %v2258 = vld [vmem:[%s5 + $0x38] sm:$0xf]
      %v2259 = vld [vmem:[%s5 + $0x3c] sm:$0xf]
      %v2260 = vld [vmem:[%s6] sm:$0x1]
      %v2262 = vperm.slane %v2260, 0
      %v2280 = vunpack.c.l.b16 %v2244
      %v2281 = vunpack.c.l.b16 %v2245
      %v2282 = vunpack.c.l.b16 %v2246
      %v2283 = vunpack.c.l.b16 %v2247
      %v2284 = vunpack.c.l.b16 %v2248
      %v2285 = vunpack.c.l.b16 %v2249
      %v2286 = vunpack.c.l.b16 %v2250
      %v2287 = vunpack.c.l.b16 %v2251
      %v2288 = vunpack.c.l.b16 %v2252
      %v2289 = vunpack.c.l.b16 %v2253
      %v2290 = vunpack.c.l.b16 %v2254
      %v2291 = vunpack.c.l.b16 %v2255
      %v2292 = vunpack.c.l.b16 %v2256
      %v2293 = vunpack.c.l.b16 %v2257
      %v2294 = vunpack.c.l.b16 %v2258
      %v2295 = vunpack.c.l.b16 %v2259
      %v2296 = vpack.c.b16 %v2281, %v2280
      %v2297 = vpack.c.b16 %v2283, %v2282
      %v2298 = vpack.c.b16 %v2285, %v2284
      %v2299 = vpack.c.b16 %v2287, %v2286
      %v2300 = vpack.c.b16 %v2289, %v2288
      %v2301 = vpack.c.b16 %v2291, %v2290
      %v2302 = vpack.c.b16 %v2293, %v2292
      %v2303 = vpack.c.b16 %v2295, %v2294
      %2312 = vmatpush.bf16.msra.mxu0 %v2303
      %2313 = vmatpush.bf16.msra.mxu0 %v2302
      %2314 = vmatpush.bf16.msra.mxu0 %v2301
      %2315 = vmatpush.bf16.msra.mxu0 %v2300
      %2316 = vmatpush.bf16.msra.mxu0 %v2299
      %2317 = vmatpush.bf16.msra.mxu0 %v2298
      %2318 = vmatpush.bf16.msra.mxu0 %v2297
      %2319 = vmatpush.bf16.msra.mxu0 %v2296
      %2320 = vmatmul.bf16.gmra.mxu0 %v2228
      %v2321 = vpop.f32.mrf.mxu0
      %v2322 = vadd.f32 %v2262, %v2321
      %v2323 = vpop.f32.mrf.mxu0
      %v2324 = vadd.f32 %v2262, %v2323
      %2325 = vmatmul.bf16.gmra.mxu0 %v2229
      %v2326 = vpop.f32.mrf.mxu0
      %v2327 = vadd.f32 %v2262, %v2326
      %v2328 = vpop.f32.mrf.mxu0
      %v2329 = vadd.f32 %v2262, %v2328
      %2330 = vmatmul.bf16.gmra.mxu0 %v2230
      %v2331 = vpop.f32.mrf.mxu0
      %v2332 = vadd.f32 %v2262, %v2331
      %v2333 = vpop.f32.mrf.mxu0
      %v2334 = vadd.f32 %v2262, %v2333
      %2335 = vmatmul.bf16.gmra.mxu0 %v2231
      %v2336 = vpop.f32.mrf.mxu0
      %v2337 = vadd.f32 %v2262, %v2336
      %v2338 = vpop.f32.mrf.mxu0
      %v2339 = vadd.f32 %v2262, %v2338
      %2340 = vmatmul.bf16.gmra.mxu0 %v2232
      %v2341 = vpop.f32.mrf.mxu0
      %v2342 = vadd.f32 %v2262, %v2341
      %v2343 = vpop.f32.mrf.mxu0
      %v2344 = vadd.f32 %v2262, %v2343
      %2345 = vmatmul.bf16.gmra.mxu0 %v2233
      %v2346 = vpop.f32.mrf.mxu0
      %v2347 = vadd.f32 %v2262, %v2346
      %v2348 = vpop.f32.mrf.mxu0
      %v2349 = vadd.f32 %v2262, %v2348
      %2350 = vmatmul.bf16.gmra.mxu0 %v2234
      %v2351 = vpop.f32.mrf.mxu0
      %v2352 = vadd.f32 %v2262, %v2351
      %v2353 = vpop.f32.mrf.mxu0
      %v2354 = vadd.f32 %v2262, %v2353
      %2355 = vmatmul.bf16.gmra.mxu0 %v2235
      %v2356 = vpop.f32.mrf.mxu0
      %v2357 = vadd.f32 %v2262, %v2356
      %v2358 = vpop.f32.mrf.mxu0
      %v2359 = vadd.f32 %v2262, %v2358
      %2360 = vmatmul.bf16.gmra.mxu0 %v2236
      %v2361 = vpop.f32.mrf.mxu0
      %v2362 = vadd.f32 %v2262, %v2361
      %v2363 = vpop.f32.mrf.mxu0
      %v2364 = vadd.f32 %v2262, %v2363
      %2365 = vmatmul.bf16.gmra.mxu0 %v2237
      %v2366 = vpop.f32.mrf.mxu0
      %v2367 = vadd.f32 %v2262, %v2366
      %v2368 = vpop.f32.mrf.mxu0
      %v2369 = vadd.f32 %v2262, %v2368
      %2370 = vmatmul.bf16.gmra.mxu0 %v2238
      %v2371 = vpop.f32.mrf.mxu0
      %v2372 = vadd.f32 %v2262, %v2371
      %v2373 = vpop.f32.mrf.mxu0
      %v2374 = vadd.f32 %v2262, %v2373
      %2375 = vmatmul.bf16.gmra.mxu0 %v2239
      %v2376 = vpop.f32.mrf.mxu0
      %v2377 = vadd.f32 %v2262, %v2376
      %v2378 = vpop.f32.mrf.mxu0
      %v2379 = vadd.f32 %v2262, %v2378
      %2380 = vmatmul.bf16.gmra.mxu0 %v2240
      %v2381 = vpop.f32.mrf.mxu0
      %v2382 = vadd.f32 %v2262, %v2381
      %v2383 = vpop.f32.mrf.mxu0
      %v2384 = vadd.f32 %v2262, %v2383
      %2385 = vmatmul.bf16.gmra.mxu0 %v2241
      %v2386 = vpop.f32.mrf.mxu0
      %v2387 = vadd.f32 %v2262, %v2386
      %v2388 = vpop.f32.mrf.mxu0
      %v2389 = vadd.f32 %v2262, %v2388
      %2390 = vmatmul.bf16.gmra.mxu0 %v2242
      %v2391 = vpop.f32.mrf.mxu0
      %v2392 = vadd.f32 %v2262, %v2391
      %v2393 = vpop.f32.mrf.mxu0
      %v2394 = vadd.f32 %v2262, %v2393
      %2395 = vmatmul.bf16.gmra.mxu0 %v2243
      %v2396 = vpop.f32.mrf.mxu0
      %v2397 = vadd.f32 %v2262, %v2396
      %v2398 = vpop.f32.mrf.mxu0
      %v2399 = vadd.f32 %v2262, %v2398
      %2400 = vdwg.mxu0
      %2401 = vst [vmem:[%s302] sm:$0xff] %v2322
      %2402 = vst [vmem:[%s302 + $0x8] sm:$0xff] %v2324
      %2403 = vst [vmem:[%s302 + $0x10] sm:$0xff] %v2327
      %2404 = vst [vmem:[%s302 + $0x18] sm:$0xff] %v2329
      %2405 = vst [vmem:[%s302 + $0x20] sm:$0xff] %v2332
      %2406 = vst [vmem:[%s302 + $0x28] sm:$0xff] %v2334
      %2407 = vst [vmem:[%s302 + $0x30] sm:$0xff] %v2337
      %2408 = vst [vmem:[%s302 + $0x38] sm:$0xff] %v2339
      %2409 = vst [vmem:[%s302 + $0x40] sm:$0xff] %v2342
      %2410 = vst [vmem:[%s302 + $0x48] sm:$0xff] %v2344
      %2411 = vst [vmem:[%s302 + $0x50] sm:$0xff] %v2347
      %2412 = vst [vmem:[%s302 + $0x58] sm:$0xff] %v2349
      %2413 = vst [vmem:[%s302 + $0x60] sm:$0xff] %v2352
      %2414 = vst [vmem:[%s302 + $0x68] sm:$0xff] %v2354
      %2415 = vst [vmem:[%s302 + $0x70] sm:$0xff] %v2357
      %2416 = vst [vmem:[%s302 + $0x78] sm:$0xff] %v2359
      %2417 = vst [vmem:[%s302 + $0x80] sm:$0xff] %v2362
      %2418 = vst [vmem:[%s302 + $0x88] sm:$0xff] %v2364
      %2419 = vst [vmem:[%s302 + $0x90] sm:$0xff] %v2367
      %2420 = vst [vmem:[%s302 + $0x98] sm:$0xff] %v2369
      %2421 = vst [vmem:[%s302 + $0xa0] sm:$0xff] %v2372
      %2422 = vst [vmem:[%s302 + $0xa8] sm:$0xff] %v2374
      %2423 = vst [vmem:[%s302 + $0xb0] sm:$0xff] %v2377
      %2424 = vst [vmem:[%s302 + $0xb8] sm:$0xff] %v2379
      %2425 = vst [vmem:[%s302 + $0xc0] sm:$0xff] %v2382
      %2426 = vst [vmem:[%s302 + $0xc8] sm:$0xff] %v2384
      %2427 = vst [vmem:[%s302 + $0xd0] sm:$0xff] %v2387
      %2428 = vst [vmem:[%s302 + $0xd8] sm:$0xff] %v2389
      %2429 = vst [vmem:[%s302 + $0xe0] sm:$0xff] %v2392
      %2430 = vst [vmem:[%s302 + $0xe8] sm:$0xff] %v2394
      %2431 = vst [vmem:[%s302 + $0xf0] sm:$0xff] %v2397
      %2432 = vst [vmem:[%s302 + $0xf8] sm:$0xff] %v2399
      %s2433 = smul.u32 32, %s18
      %p2434 = scmp.lt.s32.totalorder %s2433, 63
      %s2435 = scalar_select %p2434, %s2433, 63
      %s2436 = smul.addr %s2435, 8
      %s2437 = scalar_lea.vmem %s7, %s2436
      // Predicated region
      $region49: #{autocorrect_ffn_forward.1} parent=47 // pred_check
        %p2438 = pneg %p193
      $region50: #{autocorrect_ffn_forward.1} parent=47 // pred_check_branch
        %2440 = sbr.rel (%p2438) target = $region52
      $region51: #{autocorrect_ffn_forward.1} parent=47 // pred_region
        %s2441 = smul.u32 32, %s18
      $region52: #{autocorrect_ffn_forward.1} parent=47 // pred_fallthru
        _
    $region48: #{autocorrect_ffn_forward.1} parent=5 // pred_fallthru
      _
    %p2442 = scmp.le.s32.totalorder 2, %s13
    // Predicated region
    $region53: #{autocorrect_ffn_forward.1} parent=5 // pred_check
      %p2443 = pneg %p2442
    $region54: #{autocorrect_ffn_forward.1} parent=5 // pred_check_branch
      %2445 = sbr.rel (%p2443) target = $region56
    $region55: #{autocorrect_ffn_forward.1} parent=5 // pred_region
      %s2446 = ssub.s32 %s13, 2
      // Predicated region
      $region57: #{autocorrect_ffn_forward.1} parent=55 // pred_check
        %p2447 = pneg %p199
      $region58: #{autocorrect_ffn_forward.1} parent=55 // pred_check_branch
        %2449 = sbr.rel (%p2447) target = $region60
      $region59: #{autocorrect_ffn_forward.1} parent=55 // pred_region
        %s2450 = smul.u32 32, %s19
        %p2451 = scmp.lt.s32.totalorder %s2450, 63
        %s2452 = scalar_select %p2451, %s2450, 63
        %s2453 = smul.addr %s2452, 8
        %s2454 = scalar_lea.vmem %s7, %s2453
      $region60: #{autocorrect_ffn_forward.1} parent=55 // pred_fallthru
        _
    $region56: #{autocorrect_ffn_forward.1} parent=5 // pred_fallthru
      _
  $region6: #{autocorrect_ffn_forward.1} parent=0 // loop_footer
    %s17 = sadd.s32 1, %s13
  $region7: #{autocorrect_ffn_forward.1} parent=0 // loop_footer_branch
    %12 = sbr.rel target = $region3
  $region8: #{autocorrect_ffn_forward.1} parent=0 // loop_exit
    _

</llo_original>
